<compile_context>
chip_gen: v6e
topology: v6e:2x2x1
jax: 0.10.0
libtpu: 0.0.40
codegen_flags: <defaults>
</compile_context>

<pallas_src>
import functools

import jax
import jax.numpy as jnp
from jax.experimental import pallas as pl
from jax.experimental.pallas import tpu as pltpu


# ----------------------------------------------------------------------------
# Pallas kernel: complex mode mixing (Karatsuba, Cin-accumulation, lane-dense).
# ----------------------------------------------------------------------------
def _spectral_mix_kernel(x_ref, w_ref, o_ref):
    # x_ref: (2, Cin, Bt, Mpad)   [real, imag]
    # w_ref: (3, Cin, Ct, Mpad)   [wr, wi, wr+wi]
    # o_ref: (2, Bt, Ct, Mpad)    [real, imag]
    cin = x_ref.shape[1]
    bt = x_ref.shape[2]
    ct = w_ref.shape[2]
    mpad = x_ref.shape[3]

    s1 = jnp.zeros((bt, ct, mpad), jnp.float32)   # sum_i xr*wr
    s2 = jnp.zeros((bt, ct, mpad), jnp.float32)   # sum_i xi*wi
    s3 = jnp.zeros((bt, ct, mpad), jnp.float32)   # sum_i (xr+xi)*(wr+wi)

    # Static unroll over input channels: per step only (Bt,Mpad) x-rows and
    # (Ct,Mpad) weight slabs are live -> no (Cin,Ct,Mpad) temporaries.
    for i in range(cin):
        xr_i = x_ref[0, i]                 # (Bt, Mpad)
        xi_i = x_ref[1, i]
        xs_i = xr_i + xi_i                 # Karatsuba sum of x (cheap add)
        wr_i = w_ref[0, i]                 # (Ct, Mpad)
        wi_i = w_ref[1, i]
        ws_i = w_ref[2, i]                 # precomputed wr+wi
        s1 = s1 + xr_i[:, None, :] * wr_i[None, :, :]
        s2 = s2 + xi_i[:, None, :] * wi_i[None, :, :]
        s3 = s3 + xs_i[:, None, :] * ws_i[None, :, :]

    o_ref[0] = s1 - s2             # real part
    o_ref[1] = s3 - s1 - s2        # imag part


def _round_up(n, m):
    return -(-n // m) * m


def _pick_batch_tile(b):
    # Whole batch as one block when small (block == full array dim is allowed by
    # the (8,128) tiling rule); otherwise 8-row sublane-aligned batch tiles.
    return b if b <= 8 else 8


def _pick_cout_tile(cout, cin, mpad):
    # Shrink the Cout tile only when the (double-buffered) weight slab would get
    # large, so VMEM stays bounded on v7x (64 MiB physical).  Halving while
    # ct % 16 == 0 keeps ct a multiple of 8 and a divisor of cout.
    ct = cout
    while ct % 16 == 0 and 3 * cin * ct * mpad * 4 > (8 << 20):
        ct //= 2
    return ct


def _spectral_mix(x_pack, w_pack, bt, ct):
    _, cin, bpad, mpad = x_pack.shape
    cout = w_pack.shape[2]
    grid = (bpad // bt, cout // ct)

    x_spec = pl.BlockSpec((2, cin, bt, mpad), lambda b, c: (0, 0, b, 0))
    w_spec = pl.BlockSpec((3, cin, ct, mpad), lambda b, c: (0, 0, c, 0))
    o_spec = pl.BlockSpec((2, bt, ct, mpad), lambda b, c: (0, b, c, 0))

    # Working-set estimate (double-buffered blocks) -> raise the scoped VMEM
    # limit only when needed (v5e default 16 MiB is the tightest); cap below
    # v7x's 64 MiB physical VMEM.
    x_blk = 2 * cin * bt * mpad * 4
    w_blk = 3 * cin * ct * mpad * 4
    o_blk = 2 * bt * ct * mpad * 4
    est = 2 * (x_blk + w_blk + o_blk) + (2 << 20)
    vmem_limit = int(min(est, 48 << 20)) if est > (16 << 20) else None

    return pl.pallas_call(
        _spectral_mix_kernel,
        out_shape=jax.ShapeDtypeStruct((2, bpad, cout, mpad), jnp.float32),
        grid_spec=pltpu.PrefetchScalarGridSpec(
            num_scalar_prefetch=0,
            grid=grid,
            in_specs=[x_spec, w_spec],
            out_specs=o_spec,
        ),
        compiler_params=pltpu.CompilerParams(
            dimension_semantics=("parallel", "parallel"),
            vmem_limit_bytes=vmem_limit,
        ),
    )(x_pack, w_pack)


def _pack_weights(weights1, weights2, mpad):
    cin, cout, m1, m2 = weights1.shape
    m = 2 * m1 * m2
    w = jnp.concatenate([weights1, weights2], axis=2).reshape(cin, cout, m)
    wr = jnp.real(w).astype(jnp.float32)
    wi = jnp.imag(w).astype(jnp.float32)
    w_pack = jnp.stack([wr, wi, wr + wi])                 # Karatsuba ws = wr+wi
    return jnp.pad(w_pack, ((0, 0), (0, 0), (0, 0), (0, mpad - m)))


# ----------------------------------------------------------------------------
# SpectralConv2d_fast forward (FFT glue in XLA, mode mixing in Pallas).
# ----------------------------------------------------------------------------
def spectral_conv2d_fast(x, weights1, weights2, modes1, modes2):
    """x: [B, Cin, H, W] f32 ; weights: [Cin, Cout, m1, m2] complex64."""
    B, Cin, H, W = x.shape
    Cout = weights1.shape[1]
    Wf = W // 2 + 1
    m1, m2 = modes1, modes2
    M = 2 * m1 * m2
    Mpad = _round_up(M, 128)                       # lane-dense last dim

    x_ft = jnp.fft.rfft2(x)                        # [B, Cin, H, Wf] complex64

    # Fused band-gather + real/imag split + layout + pad (single slab each).
    x_modes = jnp.concatenate(
        [x_ft[:, :, :m1, :m2], x_ft[:, :, H - m1:, :m2]], axis=2
    ).reshape(B, Cin, M)
    x_pack = jnp.stack([jnp.real(x_modes), jnp.imag(x_modes)]).astype(jnp.float32)
    x_pack = jnp.transpose(x_pack, (0, 2, 1, 3))   # [2, Cin, B, M]

    bt = _pick_batch_tile(B)
    bpad = _round_up(B, bt)
    x_pack = jnp.pad(x_pack, ((0, 0), (0, 0), (0, bpad - B), (0, Mpad - M)))

    w_pack = _pack_weights(weights1, weights2, Mpad)       # [3, Cin, Cout, Mpad]
    ct = _pick_cout_tile(Cout, Cin, Mpad)

    out_pack = _spectral_mix(x_pack, w_pack, bt, ct)       # [2, bpad, Cout, Mpad]
    out_r = out_pack[0, :B, :, :M].reshape(B, Cout, 2 * m1, m2)
    out_i = out_pack[1, :B, :, :M].reshape(B, Cout, 2 * m1, m2)
    out_modes = jax.lax.complex(out_r, out_i)

    # Assemble the padded spectrum: low rows | zero rows | high rows, then pad
    # the retained m2 columns out to Wf.  (Concat + pad -> no scatter writes.)
    zmid = jnp.zeros((B, Cout, H - 2 * m1, m2), jnp.complex64)
    rows = jnp.concatenate([out_modes[:, :, :m1], zmid, out_modes[:, :, m1:]], axis=2)
    out_ft = jnp.pad(rows, ((0, 0), (0, 0), (0, 0), (0, Wf - m2)))

    return jnp.fft.irfft2(out_ft, s=(H, W)).astype(jnp.float32)


def spectral_conv2d_reference(x, weights1, weights2, modes1, modes2):
    """Pure-JAX reference matching the PyTorch SpectralConv2d_fast.forward."""
    B, Cin, H, W = x.shape
    Cout = weights1.shape[1]
    Wf = W // 2 + 1
    x_ft = jnp.fft.rfft2(x)
    out_ft = jnp.zeros((B, Cout, H, Wf), jnp.complex64)
    lo = jnp.einsum("bixy,ioxy->boxy", x_ft[:, :, :modes1, :modes2], weights1)
    hi = jnp.einsum("bixy,ioxy->boxy", x_ft[:, :, H - modes1:, :modes2], weights2)
    out_ft = out_ft.at[:, :, :modes1, :modes2].set(lo)
    out_ft = out_ft.at[:, :, H - modes1:, :modes2].set(hi)
    return jnp.fft.irfft2(out_ft, s=(H, W)).astype(jnp.float32)


# ----------------------------------------------------------------------------
# FNO2d forward (mirrors the PyTorch module; pointwise/linear layers stay in
# XLA which already maps them to the MXU).
# ----------------------------------------------------------------------------
def _get_grid(batchsize, size_x, size_y):
    gridx = jnp.linspace(0.0, 5.5, size_x, dtype=jnp.float32).reshape(1, size_x, 1, 1)
    gridx = jnp.broadcast_to(gridx, (batchsize, size_x, size_y, 1))
    gridy = jnp.linspace(0.0, 5.5, size_y, dtype=jnp.float32).reshape(1, 1, size_y, 1)
    gridy = jnp.broadcast_to(gridy, (batchsize, size_x, size_y, 1))
    return jnp.concatenate([gridx, gridy], axis=-1)


def fno2d_forward(params, x, *, modes1, modes2, nlayer, spectral_fn):
    B, size_x, size_y, _ = x.shape
    grid = _get_grid(B, size_x // 2, size_y)
    # split stacked (ux, uy) fields along dim 1 and concat with the grid
    x = jnp.concatenate([x[:, :size_y], x[:, size_y:], grid], axis=-1)   # (B,sy,sy,4)
    x = x @ params["W0"] + params["b0"]
    x = jnp.transpose(x, (0, 3, 1, 2))                                   # NCHW
    coef = 1.0 / nlayer

    def layer(xc):
        x1 = spectral_fn(xc, params["w1c"], params["w2c"], modes1, modes2)
        x2 = (jnp.einsum("bchw,oc->bohw", xc, params["Wc"])
              + params["bc"][None, :, None, None])
        return x1, x2

    for _ in range(nlayer - 1):
        x1, x2 = layer(x)
        x = jax.nn.gelu(x1 + x2, approximate=False) * coef + x
    x1, x2 = layer(x)
    x = (x1 + x2) * coef + x

    x = jnp.transpose(x, (0, 2, 3, 1))
    x = x @ params["W1"] + params["b1"]
    x = jax.nn.gelu(x, approximate=False)
    x = x @ params["W2"] + params["b2"]
    return x


if __name__ == "__main__":
    # Small deterministic setup consistent with the module: input is the stacked
    # (ux, uy) boundary fields, shape (B, 2*S, S, 1); width=16, 1 shared Fourier
    # layer applied nlayer times.
    B = 2
    size_y = 16
    size_x = 2 * size_y
    width = 16
    modes1 = modes2 = 4
    nlayer = 3

    key = jax.random.PRNGKey(0)
    keys = jax.random.split(key, 12)
    x_in = jax.random.normal(keys[0], (B, size_x, size_y, 1), jnp.float32)

    scale = 1.0 / (width * width)

    def cplx_uniform(kr, ki, shape):
        return (scale * (jax.random.uniform(kr, shape)
                         + 1j * jax.random.uniform(ki, shape))).astype(jnp.complex64)

    params = dict(
        W0=0.5 * jax.random.normal(keys[1], (4, width), jnp.float32),
        b0=0.1 * jax.random.normal(keys[2], (width,), jnp.float32),
        w1c=cplx_uniform(keys[3], keys[4], (width, width, modes1, modes2)),
        w2c=cplx_uniform(keys[5], keys[6], (width, width, modes1, modes2)),
        Wc=0.25 * jax.random.normal(keys[7], (width, width), jnp.float32),
        bc=0.1 * jax.random.normal(keys[8], (width,), jnp.float32),
        W1=0.25 * jax.random.normal(keys[9], (width, 64), jnp.float32),
        b1=jnp.zeros((64,), jnp.float32),
        W2=0.25 * jax.random.normal(keys[10], (64, 1), jnp.float32),
        b2=jnp.zeros((1,), jnp.float32),
    )

    fwd = jax.jit(functools.partial(
        fno2d_forward, modes1=modes1, modes2=modes2, nlayer=nlayer,
        spectral_fn=spectral_conv2d_fast))
    ref_fwd = functools.partial(
        fno2d_forward, modes1=modes1, modes2=modes2, nlayer=nlayer,
        spectral_fn=spectral_conv2d_reference)

    out = jax.block_until_ready(fwd(params, x_in))
    ref = jax.block_until_ready(ref_fwd(params, x_in))
    assert out.shape == (B, size_y, size_y, 1)
    assert jnp.allclose(out, ref, atol=1e-4, rtol=1e-4), "FNO2d mismatch vs reference"

    # Also validate the Pallas spectral-conv kernel in isolation.
    xs = jax.random.normal(keys[11], (B, width, size_y, size_y), jnp.float32)
    o_pal = jax.block_until_ready(
        spectral_conv2d_fast(xs, params["w1c"], params["w2c"], modes1, modes2))
    o_ref = spectral_conv2d_reference(xs, params["w1c"], params["w2c"], modes1, modes2)
    assert jnp.allclose(o_pal, o_ref, atol=1e-4, rtol=1e-4), "SpectralConv2d mismatch"

    print("KERNEL_OK")
</pallas_src>

<mosaic_0001>
module attributes {stable_mosaic.version = 11 : i64} {
  func.func @_spectral_mix_kernel(%arg0: i32, %arg1: i32, %arg2: memref<2x16x2x128xf32, #tpu.memory_space<vmem>>, %arg3: memref<3x16x16x128xf32, #tpu.memory_space<vmem>>, %arg4: memref<2x2x16x128xf32, #tpu.memory_space<vmem>>) attributes {dimension_semantics = [#tpu.dimension_semantics<parallel>, #tpu.dimension_semantics<parallel>], iteration_bounds = array<i64: 1, 1>, scalar_prefetch = 0 : i64, scratch_operands = 0 : i64, tpu.core_type = #tpu.core_type<tc>, window_params = [{transform_indices = @transform_0, window_bounds = array<i64: 2, 16, 2, 128>}, {transform_indices = @transform_1, window_bounds = array<i64: 3, 16, 16, 128>}, {transform_indices = @transform_2, window_bounds = array<i64: 2, 2, 16, 128>}]} {
    %cst = arith.constant 0.000000e+00 : f32
    %0 = vector.broadcast %cst : f32 to vector<2x16x128xf32>
    %cst_0 = arith.constant 0.000000e+00 : f32
    %1 = vector.broadcast %cst_0 : f32 to vector<2x16x128xf32>
    %cst_1 = arith.constant 0.000000e+00 : f32
    %2 = vector.broadcast %cst_1 : f32 to vector<2x16x128xf32>
    %c0 = arith.constant 0 : index
    %c0_2 = arith.constant 0 : index
    %c0_3 = arith.constant 0 : index
    %c0_4 = arith.constant 0 : index
    %3 = vector.load %arg2[%c0, %c0_2, %c0_3, %c0_4] : memref<2x16x2x128xf32, #tpu.memory_space<vmem>>, vector<1x1x2x128xf32>
    %4 = vector.shape_cast %3 : vector<1x1x2x128xf32> to vector<2x128xf32>
    %c1 = arith.constant 1 : index
    %c0_5 = arith.constant 0 : index
    %c0_6 = arith.constant 0 : index
    %c0_7 = arith.constant 0 : index
    %5 = vector.load %arg2[%c1, %c0_5, %c0_6, %c0_7] : memref<2x16x2x128xf32, #tpu.memory_space<vmem>>, vector<1x1x2x128xf32>
    %6 = vector.shape_cast %5 : vector<1x1x2x128xf32> to vector<2x128xf32>
    %7 = arith.addf %4, %6 : vector<2x128xf32>
    %c0_8 = arith.constant 0 : index
    %c0_9 = arith.constant 0 : index
    %c0_10 = arith.constant 0 : index
    %c0_11 = arith.constant 0 : index
    %8 = vector.load %arg3[%c0_8, %c0_9, %c0_10, %c0_11] : memref<3x16x16x128xf32, #tpu.memory_space<vmem>>, vector<1x1x16x128xf32>
    %9 = vector.shape_cast %8 : vector<1x1x16x128xf32> to vector<16x128xf32>
    %c1_12 = arith.constant 1 : index
    %c0_13 = arith.constant 0 : index
    %c0_14 = arith.constant 0 : index
    %c0_15 = arith.constant 0 : index
    %10 = vector.load %arg3[%c1_12, %c0_13, %c0_14, %c0_15] : memref<3x16x16x128xf32, #tpu.memory_space<vmem>>, vector<1x1x16x128xf32>
    %11 = vector.shape_cast %10 : vector<1x1x16x128xf32> to vector<16x128xf32>
    %c2 = arith.constant 2 : index
    %c0_16 = arith.constant 0 : index
    %c0_17 = arith.constant 0 : index
    %c0_18 = arith.constant 0 : index
    %12 = vector.load %arg3[%c2, %c0_16, %c0_17, %c0_18] : memref<3x16x16x128xf32, #tpu.memory_space<vmem>>, vector<1x1x16x128xf32>
    %13 = vector.shape_cast %12 : vector<1x1x16x128xf32> to vector<16x128xf32>
    %14 = vector.shape_cast %4 : vector<2x128xf32> to vector<2x1x128xf32>
    %15 = vector.shape_cast %9 : vector<16x128xf32> to vector<1x16x128xf32>
    %16 = vector.broadcast %14 : vector<2x1x128xf32> to vector<2x16x128xf32>
    %17 = vector.broadcast %15 : vector<1x16x128xf32> to vector<2x16x128xf32>
    %18 = arith.mulf %16, %17 : vector<2x16x128xf32>
    %19 = arith.addf %0, %18 : vector<2x16x128xf32>
    %20 = vector.shape_cast %6 : vector<2x128xf32> to vector<2x1x128xf32>
    %21 = vector.shape_cast %11 : vector<16x128xf32> to vector<1x16x128xf32>
    %22 = vector.broadcast %20 : vector<2x1x128xf32> to vector<2x16x128xf32>
    %23 = vector.broadcast %21 : vector<1x16x128xf32> to vector<2x16x128xf32>
    %24 = arith.mulf %22, %23 : vector<2x16x128xf32>
    %25 = arith.addf %1, %24 : vector<2x16x128xf32>
    %26 = vector.shape_cast %7 : vector<2x128xf32> to vector<2x1x128xf32>
    %27 = vector.shape_cast %13 : vector<16x128xf32> to vector<1x16x128xf32>
    %28 = vector.broadcast %26 : vector<2x1x128xf32> to vector<2x16x128xf32>
    %29 = vector.broadcast %27 : vector<1x16x128xf32> to vector<2x16x128xf32>
    %30 = arith.mulf %28, %29 : vector<2x16x128xf32>
    %31 = arith.addf %2, %30 : vector<2x16x128xf32>
    %c0_19 = arith.constant 0 : index
    %c1_20 = arith.constant 1 : index
    %c0_21 = arith.constant 0 : index
    %c0_22 = arith.constant 0 : index
    %32 = vector.load %arg2[%c0_19, %c1_20, %c0_21, %c0_22] : memref<2x16x2x128xf32, #tpu.memory_space<vmem>>, vector<1x1x2x128xf32>
    %33 = vector.shape_cast %32 : vector<1x1x2x128xf32> to vector<2x128xf32>
    %c1_23 = arith.constant 1 : index
    %c1_24 = arith.constant 1 : index
    %c0_25 = arith.constant 0 : index
    %c0_26 = arith.constant 0 : index
    %34 = vector.load %arg2[%c1_23, %c1_24, %c0_25, %c0_26] : memref<2x16x2x128xf32, #tpu.memory_space<vmem>>, vector<1x1x2x128xf32>
    %35 = vector.shape_cast %34 : vector<1x1x2x128xf32> to vector<2x128xf32>
    %36 = arith.addf %33, %35 : vector<2x128xf32>
    %c0_27 = arith.constant 0 : index
    %c1_28 = arith.constant 1 : index
    %c0_29 = arith.constant 0 : index
    %c0_30 = arith.constant 0 : index
    %37 = vector.load %arg3[%c0_27, %c1_28, %c0_29, %c0_30] : memref<3x16x16x128xf32, #tpu.memory_space<vmem>>, vector<1x1x16x128xf32>
    %38 = vector.shape_cast %37 : vector<1x1x16x128xf32> to vector<16x128xf32>
    %c1_31 = arith.constant 1 : index
    %c1_32 = arith.constant 1 : index
    %c0_33 = arith.constant 0 : index
    %c0_34 = arith.constant 0 : index
    %39 = vector.load %arg3[%c1_31, %c1_32, %c0_33, %c0_34] : memref<3x16x16x128xf32, #tpu.memory_space<vmem>>, vector<1x1x16x128xf32>
    %40 = vector.shape_cast %39 : vector<1x1x16x128xf32> to vector<16x128xf32>
    %c2_35 = arith.constant 2 : index
    %c1_36 = arith.constant 1 : index
    %c0_37 = arith.constant 0 : index
    %c0_38 = arith.constant 0 : index
    %41 = vector.load %arg3[%c2_35, %c1_36, %c0_37, %c0_38] : memref<3x16x16x128xf32, #tpu.memory_space<vmem>>, vector<1x1x16x128xf32>
    %42 = vector.shape_cast %41 : vector<1x1x16x128xf32> to vector<16x128xf32>
    %43 = vector.shape_cast %33 : vector<2x128xf32> to vector<2x1x128xf32>
    %44 = vector.shape_cast %38 : vector<16x128xf32> to vector<1x16x128xf32>
    %45 = vector.broadcast %43 : vector<2x1x128xf32> to vector<2x16x128xf32>
    %46 = vector.broadcast %44 : vector<1x16x128xf32> to vector<2x16x128xf32>
    %47 = arith.mulf %45, %46 : vector<2x16x128xf32>
    %48 = arith.addf %19, %47 : vector<2x16x128xf32>
    %49 = vector.shape_cast %35 : vector<2x128xf32> to vector<2x1x128xf32>
    %50 = vector.shape_cast %40 : vector<16x128xf32> to vector<1x16x128xf32>
    %51 = vector.broadcast %49 : vector<2x1x128xf32> to vector<2x16x128xf32>
    %52 = vector.broadcast %50 : vector<1x16x128xf32> to vector<2x16x128xf32>
    %53 = arith.mulf %51, %52 : vector<2x16x128xf32>
    %54 = arith.addf %25, %53 : vector<2x16x128xf32>
    %55 = vector.shape_cast %36 : vector<2x128xf32> to vector<2x1x128xf32>
    %56 = vector.shape_cast %42 : vector<16x128xf32> to vector<1x16x128xf32>
    %57 = vector.broadcast %55 : vector<2x1x128xf32> to vector<2x16x128xf32>
    %58 = vector.broadcast %56 : vector<1x16x128xf32> to vector<2x16x128xf32>
    %59 = arith.mulf %57, %58 : vector<2x16x128xf32>
    %60 = arith.addf %31, %59 : vector<2x16x128xf32>
    %c0_39 = arith.constant 0 : index
    %c2_40 = arith.constant 2 : index
    %c0_41 = arith.constant 0 : index
    %c0_42 = arith.constant 0 : index
    %61 = vector.load %arg2[%c0_39, %c2_40, %c0_41, %c0_42] : memref<2x16x2x128xf32, #tpu.memory_space<vmem>>, vector<1x1x2x128xf32>
    %62 = vector.shape_cast %61 : vector<1x1x2x128xf32> to vector<2x128xf32>
    %c1_43 = arith.constant 1 : index
    %c2_44 = arith.constant 2 : index
    %c0_45 = arith.constant 0 : index
    %c0_46 = arith.constant 0 : index
    %63 = vector.load %arg2[%c1_43, %c2_44, %c0_45, %c0_46] : memref<2x16x2x128xf32, #tpu.memory_space<vmem>>, vector<1x1x2x128xf32>
    %64 = vector.shape_cast %63 : vector<1x1x2x128xf32> to vector<2x128xf32>
    %65 = arith.addf %62, %64 : vector<2x128xf32>
    %c0_47 = arith.constant 0 : index
    %c2_48 = arith.constant 2 : index
    %c0_49 = arith.constant 0 : index
    %c0_50 = arith.constant 0 : index
    %66 = vector.load %arg3[%c0_47, %c2_48, %c0_49, %c0_50] : memref<3x16x16x128xf32, #tpu.memory_space<vmem>>, vector<1x1x16x128xf32>
    %67 = vector.shape_cast %66 : vector<1x1x16x128xf32> to vector<16x128xf32>
    %c1_51 = arith.constant 1 : index
    %c2_52 = arith.constant 2 : index
    %c0_53 = arith.constant 0 : index
    %c0_54 = arith.constant 0 : index
    %68 = vector.load %arg3[%c1_51, %c2_52, %c0_53, %c0_54] : memref<3x16x16x128xf32, #tpu.memory_space<vmem>>, vector<1x1x16x128xf32>
    %69 = vector.shape_cast %68 : vector<1x1x16x128xf32> to vector<16x128xf32>
    %c2_55 = arith.constant 2 : index
    %c2_56 = arith.constant 2 : index
    %c0_57 = arith.constant 0 : index
    %c0_58 = arith.constant 0 : index
    %70 = vector.load %arg3[%c2_55, %c2_56, %c0_57, %c0_58] : memref<3x16x16x128xf32, #tpu.memory_space<vmem>>, vector<1x1x16x128xf32>
    %71 = vector.shape_cast %70 : vector<1x1x16x128xf32> to vector<16x128xf32>
    %72 = vector.shape_cast %62 : vector<2x128xf32> to vector<2x1x128xf32>
    %73 = vector.shape_cast %67 : vector<16x128xf32> to vector<1x16x128xf32>
    %74 = vector.broadcast %72 : vector<2x1x128xf32> to vector<2x16x128xf32>
    %75 = vector.broadcast %73 : vector<1x16x128xf32> to vector<2x16x128xf32>
    %76 = arith.mulf %74, %75 : vector<2x16x128xf32>
    %77 = arith.addf %48, %76 : vector<2x16x128xf32>
    %78 = vector.shape_cast %64 : vector<2x128xf32> to vector<2x1x128xf32>
    %79 = vector.shape_cast %69 : vector<16x128xf32> to vector<1x16x128xf32>
    %80 = vector.broadcast %78 : vector<2x1x128xf32> to vector<2x16x128xf32>
    %81 = vector.broadcast %79 : vector<1x16x128xf32> to vector<2x16x128xf32>
    %82 = arith.mulf %80, %81 : vector<2x16x128xf32>
    %83 = arith.addf %54, %82 : vector<2x16x128xf32>
    %84 = vector.shape_cast %65 : vector<2x128xf32> to vector<2x1x128xf32>
    %85 = vector.shape_cast %71 : vector<16x128xf32> to vector<1x16x128xf32>
    %86 = vector.broadcast %84 : vector<2x1x128xf32> to vector<2x16x128xf32>
    %87 = vector.broadcast %85 : vector<1x16x128xf32> to vector<2x16x128xf32>
    %88 = arith.mulf %86, %87 : vector<2x16x128xf32>
    %89 = arith.addf %60, %88 : vector<2x16x128xf32>
    %c0_59 = arith.constant 0 : index
    %c3 = arith.constant 3 : index
    %c0_60 = arith.constant 0 : index
    %c0_61 = arith.constant 0 : index
    %90 = vector.load %arg2[%c0_59, %c3, %c0_60, %c0_61] : memref<2x16x2x128xf32, #tpu.memory_space<vmem>>, vector<1x1x2x128xf32>
    %91 = vector.shape_cast %90 : vector<1x1x2x128xf32> to vector<2x128xf32>
    %c1_62 = arith.constant 1 : index
    %c3_63 = arith.constant 3 : index
    %c0_64 = arith.constant 0 : index
    %c0_65 = arith.constant 0 : index
    %92 = vector.load %arg2[%c1_62, %c3_63, %c0_64, %c0_65] : memref<2x16x2x128xf32, #tpu.memory_space<vmem>>, vector<1x1x2x128xf32>
    %93 = vector.shape_cast %92 : vector<1x1x2x128xf32> to vector<2x128xf32>
    %94 = arith.addf %91, %93 : vector<2x128xf32>
    %c0_66 = arith.constant 0 : index
    %c3_67 = arith.constant 3 : index
    %c0_68 = arith.constant 0 : index
    %c0_69 = arith.constant 0 : index
    %95 = vector.load %arg3[%c0_66, %c3_67, %c0_68, %c0_69] : memref<3x16x16x128xf32, #tpu.memory_space<vmem>>, vector<1x1x16x128xf32>
    %96 = vector.shape_cast %95 : vector<1x1x16x128xf32> to vector<16x128xf32>
    %c1_70 = arith.constant 1 : index
    %c3_71 = arith.constant 3 : index
    %c0_72 = arith.constant 0 : index
    %c0_73 = arith.constant 0 : index
    %97 = vector.load %arg3[%c1_70, %c3_71, %c0_72, %c0_73] : memref<3x16x16x128xf32, #tpu.memory_space<vmem>>, vector<1x1x16x128xf32>
    %98 = vector.shape_cast %97 : vector<1x1x16x128xf32> to vector<16x128xf32>
    %c2_74 = arith.constant 2 : index
    %c3_75 = arith.constant 3 : index
    %c0_76 = arith.constant 0 : index
    %c0_77 = arith.constant 0 : index
    %99 = vector.load %arg3[%c2_74, %c3_75, %c0_76, %c0_77] : memref<3x16x16x128xf32, #tpu.memory_space<vmem>>, vector<1x1x16x128xf32>
    %100 = vector.shape_cast %99 : vector<1x1x16x128xf32> to vector<16x128xf32>
    %101 = vector.shape_cast %91 : vector<2x128xf32> to vector<2x1x128xf32>
    %102 = vector.shape_cast %96 : vector<16x128xf32> to vector<1x16x128xf32>
    %103 = vector.broadcast %101 : vector<2x1x128xf32> to vector<2x16x128xf32>
    %104 = vector.broadcast %102 : vector<1x16x128xf32> to vector<2x16x128xf32>
    %105 = arith.mulf %103, %104 : vector<2x16x128xf32>
    %106 = arith.addf %77, %105 : vector<2x16x128xf32>
    %107 = vector.shape_cast %93 : vector<2x128xf32> to vector<2x1x128xf32>
    %108 = vector.shape_cast %98 : vector<16x128xf32> to vector<1x16x128xf32>
    %109 = vector.broadcast %107 : vector<2x1x128xf32> to vector<2x16x128xf32>
    %110 = vector.broadcast %108 : vector<1x16x128xf32> to vector<2x16x128xf32>
    %111 = arith.mulf %109, %110 : vector<2x16x128xf32>
    %112 = arith.addf %83, %111 : vector<2x16x128xf32>
    %113 = vector.shape_cast %94 : vector<2x128xf32> to vector<2x1x128xf32>
    %114 = vector.shape_cast %100 : vector<16x128xf32> to vector<1x16x128xf32>
    %115 = vector.broadcast %113 : vector<2x1x128xf32> to vector<2x16x128xf32>
    %116 = vector.broadcast %114 : vector<1x16x128xf32> to vector<2x16x128xf32>
    %117 = arith.mulf %115, %116 : vector<2x16x128xf32>
    %118 = arith.addf %89, %117 : vector<2x16x128xf32>
    %c0_78 = arith.constant 0 : index
    %c4 = arith.constant 4 : index
    %c0_79 = arith.constant 0 : index
    %c0_80 = arith.constant 0 : index
    %119 = vector.load %arg2[%c0_78, %c4, %c0_79, %c0_80] : memref<2x16x2x128xf32, #tpu.memory_space<vmem>>, vector<1x1x2x128xf32>
    %120 = vector.shape_cast %119 : vector<1x1x2x128xf32> to vector<2x128xf32>
    %c1_81 = arith.constant 1 : index
    %c4_82 = arith.constant 4 : index
    %c0_83 = arith.constant 0 : index
    %c0_84 = arith.constant 0 : index
    %121 = vector.load %arg2[%c1_81, %c4_82, %c0_83, %c0_84] : memref<2x16x2x128xf32, #tpu.memory_space<vmem>>, vector<1x1x2x128xf32>
    %122 = vector.shape_cast %121 : vector<1x1x2x128xf32> to vector<2x128xf32>
    %123 = arith.addf %120, %122 : vector<2x128xf32>
    %c0_85 = arith.constant 0 : index
    %c4_86 = arith.constant 4 : index
    %c0_87 = arith.constant 0 : index
    %c0_88 = arith.constant 0 : index
    %124 = vector.load %arg3[%c0_85, %c4_86, %c0_87, %c0_88] : memref<3x16x16x128xf32, #tpu.memory_space<vmem>>, vector<1x1x16x128xf32>
    %125 = vector.shape_cast %124 : vector<1x1x16x128xf32> to vector<16x128xf32>
    %c1_89 = arith.constant 1 : index
    %c4_90 = arith.constant 4 : index
    %c0_91 = arith.constant 0 : index
    %c0_92 = arith.constant 0 : index
    %126 = vector.load %arg3[%c1_89, %c4_90, %c0_91, %c0_92] : memref<3x16x16x128xf32, #tpu.memory_space<vmem>>, vector<1x1x16x128xf32>
    %127 = vector.shape_cast %126 : vector<1x1x16x128xf32> to vector<16x128xf32>
    %c2_93 = arith.constant 2 : index
    %c4_94 = arith.constant 4 : index
    %c0_95 = arith.constant 0 : index
    %c0_96 = arith.constant 0 : index
    %128 = vector.load %arg3[%c2_93, %c4_94, %c0_95, %c0_96] : memref<3x16x16x128xf32, #tpu.memory_space<vmem>>, vector<1x1x16x128xf32>
    %129 = vector.shape_cast %128 : vector<1x1x16x128xf32> to vector<16x128xf32>
    %130 = vector.shape_cast %120 : vector<2x128xf32> to vector<2x1x128xf32>
    %131 = vector.shape_cast %125 : vector<16x128xf32> to vector<1x16x128xf32>
    %132 = vector.broadcast %130 : vector<2x1x128xf32> to vector<2x16x128xf32>
    %133 = vector.broadcast %131 : vector<1x16x128xf32> to vector<2x16x128xf32>
    %134 = arith.mulf %132, %133 : vector<2x16x128xf32>
    %135 = arith.addf %106, %134 : vector<2x16x128xf32>
    %136 = vector.shape_cast %122 : vector<2x128xf32> to vector<2x1x128xf32>
    %137 = vector.shape_cast %127 : vector<16x128xf32> to vector<1x16x128xf32>
    %138 = vector.broadcast %136 : vector<2x1x128xf32> to vector<2x16x128xf32>
    %139 = vector.broadcast %137 : vector<1x16x128xf32> to vector<2x16x128xf32>
    %140 = arith.mulf %138, %139 : vector<2x16x128xf32>
    %141 = arith.addf %112, %140 : vector<2x16x128xf32>
    %142 = vector.shape_cast %123 : vector<2x128xf32> to vector<2x1x128xf32>
    %143 = vector.shape_cast %129 : vector<16x128xf32> to vector<1x16x128xf32>
    %144 = vector.broadcast %142 : vector<2x1x128xf32> to vector<2x16x128xf32>
    %145 = vector.broadcast %143 : vector<1x16x128xf32> to vector<2x16x128xf32>
    %146 = arith.mulf %144, %145 : vector<2x16x128xf32>
    %147 = arith.addf %118, %146 : vector<2x16x128xf32>
    %c0_97 = arith.constant 0 : index
    %c5 = arith.constant 5 : index
    %c0_98 = arith.constant 0 : index
    %c0_99 = arith.constant 0 : index
    %148 = vector.load %arg2[%c0_97, %c5, %c0_98, %c0_99] : memref<2x16x2x128xf32, #tpu.memory_space<vmem>>, vector<1x1x2x128xf32>
    %149 = vector.shape_cast %148 : vector<1x1x2x128xf32> to vector<2x128xf32>
    %c1_100 = arith.constant 1 : index
    %c5_101 = arith.constant 5 : index
    %c0_102 = arith.constant 0 : index
    %c0_103 = arith.constant 0 : index
    %150 = vector.load %arg2[%c1_100, %c5_101, %c0_102, %c0_103] : memref<2x16x2x128xf32, #tpu.memory_space<vmem>>, vector<1x1x2x128xf32>
    %151 = vector.shape_cast %150 : vector<1x1x2x128xf32> to vector<2x128xf32>
    %152 = arith.addf %149, %151 : vector<2x128xf32>
    %c0_104 = arith.constant 0 : index
    %c5_105 = arith.constant 5 : index
    %c0_106 = arith.constant 0 : index
    %c0_107 = arith.constant 0 : index
    %153 = vector.load %arg3[%c0_104, %c5_105, %c0_106, %c0_107] : memref<3x16x16x128xf32, #tpu.memory_space<vmem>>, vector<1x1x16x128xf32>
    %154 = vector.shape_cast %153 : vector<1x1x16x128xf32> to vector<16x128xf32>
    %c1_108 = arith.constant 1 : index
    %c5_109 = arith.constant 5 : index
    %c0_110 = arith.constant 0 : index
    %c0_111 = arith.constant 0 : index
    %155 = vector.load %arg3[%c1_108, %c5_109, %c0_110, %c0_111] : memref<3x16x16x128xf32, #tpu.memory_space<vmem>>, vector<1x1x16x128xf32>
    %156 = vector.shape_cast %155 : vector<1x1x16x128xf32> to vector<16x128xf32>
    %c2_112 = arith.constant 2 : index
    %c5_113 = arith.constant 5 : index
    %c0_114 = arith.constant 0 : index
    %c0_115 = arith.constant 0 : index
    %157 = vector.load %arg3[%c2_112, %c5_113, %c0_114, %c0_115] : memref<3x16x16x128xf32, #tpu.memory_space<vmem>>, vector<1x1x16x128xf32>
    %158 = vector.shape_cast %157 : vector<1x1x16x128xf32> to vector<16x128xf32>
    %159 = vector.shape_cast %149 : vector<2x128xf32> to vector<2x1x128xf32>
    %160 = vector.shape_cast %154 : vector<16x128xf32> to vector<1x16x128xf32>
    %161 = vector.broadcast %159 : vector<2x1x128xf32> to vector<2x16x128xf32>
    %162 = vector.broadcast %160 : vector<1x16x128xf32> to vector<2x16x128xf32>
    %163 = arith.mulf %161, %162 : vector<2x16x128xf32>
    %164 = arith.addf %135, %163 : vector<2x16x128xf32>
    %165 = vector.shape_cast %151 : vector<2x128xf32> to vector<2x1x128xf32>
    %166 = vector.shape_cast %156 : vector<16x128xf32> to vector<1x16x128xf32>
    %167 = vector.broadcast %165 : vector<2x1x128xf32> to vector<2x16x128xf32>
    %168 = vector.broadcast %166 : vector<1x16x128xf32> to vector<2x16x128xf32>
    %169 = arith.mulf %167, %168 : vector<2x16x128xf32>
    %170 = arith.addf %141, %169 : vector<2x16x128xf32>
    %171 = vector.shape_cast %152 : vector<2x128xf32> to vector<2x1x128xf32>
    %172 = vector.shape_cast %158 : vector<16x128xf32> to vector<1x16x128xf32>
    %173 = vector.broadcast %171 : vector<2x1x128xf32> to vector<2x16x128xf32>
    %174 = vector.broadcast %172 : vector<1x16x128xf32> to vector<2x16x128xf32>
    %175 = arith.mulf %173, %174 : vector<2x16x128xf32>
    %176 = arith.addf %147, %175 : vector<2x16x128xf32>
    %c0_116 = arith.constant 0 : index
    %c6 = arith.constant 6 : index
    %c0_117 = arith.constant 0 : index
    %c0_118 = arith.constant 0 : index
    %177 = vector.load %arg2[%c0_116, %c6, %c0_117, %c0_118] : memref<2x16x2x128xf32, #tpu.memory_space<vmem>>, vector<1x1x2x128xf32>
    %178 = vector.shape_cast %177 : vector<1x1x2x128xf32> to vector<2x128xf32>
    %c1_119 = arith.constant 1 : index
    %c6_120 = arith.constant 6 : index
    %c0_121 = arith.constant 0 : index
    %c0_122 = arith.constant 0 : index
    %179 = vector.load %arg2[%c1_119, %c6_120, %c0_121, %c0_122] : memref<2x16x2x128xf32, #tpu.memory_space<vmem>>, vector<1x1x2x128xf32>
    %180 = vector.shape_cast %179 : vector<1x1x2x128xf32> to vector<2x128xf32>
    %181 = arith.addf %178, %180 : vector<2x128xf32>
    %c0_123 = arith.constant 0 : index
    %c6_124 = arith.constant 6 : index
    %c0_125 = arith.constant 0 : index
    %c0_126 = arith.constant 0 : index
    %182 = vector.load %arg3[%c0_123, %c6_124, %c0_125, %c0_126] : memref<3x16x16x128xf32, #tpu.memory_space<vmem>>, vector<1x1x16x128xf32>
    %183 = vector.shape_cast %182 : vector<1x1x16x128xf32> to vector<16x128xf32>
    %c1_127 = arith.constant 1 : index
    %c6_128 = arith.constant 6 : index
    %c0_129 = arith.constant 0 : index
    %c0_130 = arith.constant 0 : index
    %184 = vector.load %arg3[%c1_127, %c6_128, %c0_129, %c0_130] : memref<3x16x16x128xf32, #tpu.memory_space<vmem>>, vector<1x1x16x128xf32>
    %185 = vector.shape_cast %184 : vector<1x1x16x128xf32> to vector<16x128xf32>
    %c2_131 = arith.constant 2 : index
    %c6_132 = arith.constant 6 : index
    %c0_133 = arith.constant 0 : index
    %c0_134 = arith.constant 0 : index
    %186 = vector.load %arg3[%c2_131, %c6_132, %c0_133, %c0_134] : memref<3x16x16x128xf32, #tpu.memory_space<vmem>>, vector<1x1x16x128xf32>
    %187 = vector.shape_cast %186 : vector<1x1x16x128xf32> to vector<16x128xf32>
    %188 = vector.shape_cast %178 : vector<2x128xf32> to vector<2x1x128xf32>
    %189 = vector.shape_cast %183 : vector<16x128xf32> to vector<1x16x128xf32>
    %190 = vector.broadcast %188 : vector<2x1x128xf32> to vector<2x16x128xf32>
    %191 = vector.broadcast %189 : vector<1x16x128xf32> to vector<2x16x128xf32>
    %192 = arith.mulf %190, %191 : vector<2x16x128xf32>
    %193 = arith.addf %164, %192 : vector<2x16x128xf32>
    %194 = vector.shape_cast %180 : vector<2x128xf32> to vector<2x1x128xf32>
    %195 = vector.shape_cast %185 : vector<16x128xf32> to vector<1x16x128xf32>
    %196 = vector.broadcast %194 : vector<2x1x128xf32> to vector<2x16x128xf32>
    %197 = vector.broadcast %195 : vector<1x16x128xf32> to vector<2x16x128xf32>
    %198 = arith.mulf %196, %197 : vector<2x16x128xf32>
    %199 = arith.addf %170, %198 : vector<2x16x128xf32>
    %200 = vector.shape_cast %181 : vector<2x128xf32> to vector<2x1x128xf32>
    %201 = vector.shape_cast %187 : vector<16x128xf32> to vector<1x16x128xf32>
    %202 = vector.broadcast %200 : vector<2x1x128xf32> to vector<2x16x128xf32>
    %203 = vector.broadcast %201 : vector<1x16x128xf32> to vector<2x16x128xf32>
    %204 = arith.mulf %202, %203 : vector<2x16x128xf32>
    %205 = arith.addf %176, %204 : vector<2x16x128xf32>
    %c0_135 = arith.constant 0 : index
    %c7 = arith.constant 7 : index
    %c0_136 = arith.constant 0 : index
    %c0_137 = arith.constant 0 : index
    %206 = vector.load %arg2[%c0_135, %c7, %c0_136, %c0_137] : memref<2x16x2x128xf32, #tpu.memory_space<vmem>>, vector<1x1x2x128xf32>
    %207 = vector.shape_cast %206 : vector<1x1x2x128xf32> to vector<2x128xf32>
    %c1_138 = arith.constant 1 : index
    %c7_139 = arith.constant 7 : index
    %c0_140 = arith.constant 0 : index
    %c0_141 = arith.constant 0 : index
    %208 = vector.load %arg2[%c1_138, %c7_139, %c0_140, %c0_141] : memref<2x16x2x128xf32, #tpu.memory_space<vmem>>, vector<1x1x2x128xf32>
    %209 = vector.shape_cast %208 : vector<1x1x2x128xf32> to vector<2x128xf32>
    %210 = arith.addf %207, %209 : vector<2x128xf32>
    %c0_142 = arith.constant 0 : index
    %c7_143 = arith.constant 7 : index
    %c0_144 = arith.constant 0 : index
    %c0_145 = arith.constant 0 : index
    %211 = vector.load %arg3[%c0_142, %c7_143, %c0_144, %c0_145] : memref<3x16x16x128xf32, #tpu.memory_space<vmem>>, vector<1x1x16x128xf32>
    %212 = vector.shape_cast %211 : vector<1x1x16x128xf32> to vector<16x128xf32>
    %c1_146 = arith.constant 1 : index
    %c7_147 = arith.constant 7 : index
    %c0_148 = arith.constant 0 : index
    %c0_149 = arith.constant 0 : index
    %213 = vector.load %arg3[%c1_146, %c7_147, %c0_148, %c0_149] : memref<3x16x16x128xf32, #tpu.memory_space<vmem>>, vector<1x1x16x128xf32>
    %214 = vector.shape_cast %213 : vector<1x1x16x128xf32> to vector<16x128xf32>
    %c2_150 = arith.constant 2 : index
    %c7_151 = arith.constant 7 : index
    %c0_152 = arith.constant 0 : index
    %c0_153 = arith.constant 0 : index
    %215 = vector.load %arg3[%c2_150, %c7_151, %c0_152, %c0_153] : memref<3x16x16x128xf32, #tpu.memory_space<vmem>>, vector<1x1x16x128xf32>
    %216 = vector.shape_cast %215 : vector<1x1x16x128xf32> to vector<16x128xf32>
    %217 = vector.shape_cast %207 : vector<2x128xf32> to vector<2x1x128xf32>
    %218 = vector.shape_cast %212 : vector<16x128xf32> to vector<1x16x128xf32>
    %219 = vector.broadcast %217 : vector<2x1x128xf32> to vector<2x16x128xf32>
    %220 = vector.broadcast %218 : vector<1x16x128xf32> to vector<2x16x128xf32>
    %221 = arith.mulf %219, %220 : vector<2x16x128xf32>
    %222 = arith.addf %193, %221 : vector<2x16x128xf32>
    %223 = vector.shape_cast %209 : vector<2x128xf32> to vector<2x1x128xf32>
    %224 = vector.shape_cast %214 : vector<16x128xf32> to vector<1x16x128xf32>
    %225 = vector.broadcast %223 : vector<2x1x128xf32> to vector<2x16x128xf32>
    %226 = vector.broadcast %224 : vector<1x16x128xf32> to vector<2x16x128xf32>
    %227 = arith.mulf %225, %226 : vector<2x16x128xf32>
    %228 = arith.addf %199, %227 : vector<2x16x128xf32>
    %229 = vector.shape_cast %210 : vector<2x128xf32> to vector<2x1x128xf32>
    %230 = vector.shape_cast %216 : vector<16x128xf32> to vector<1x16x128xf32>
    %231 = vector.broadcast %229 : vector<2x1x128xf32> to vector<2x16x128xf32>
    %232 = vector.broadcast %230 : vector<1x16x128xf32> to vector<2x16x128xf32>
    %233 = arith.mulf %231, %232 : vector<2x16x128xf32>
    %234 = arith.addf %205, %233 : vector<2x16x128xf32>
    %c0_154 = arith.constant 0 : index
    %c8 = arith.constant 8 : index
    %c0_155 = arith.constant 0 : index
    %c0_156 = arith.constant 0 : index
    %235 = vector.load %arg2[%c0_154, %c8, %c0_155, %c0_156] : memref<2x16x2x128xf32, #tpu.memory_space<vmem>>, vector<1x1x2x128xf32>
    %236 = vector.shape_cast %235 : vector<1x1x2x128xf32> to vector<2x128xf32>
    %c1_157 = arith.constant 1 : index
    %c8_158 = arith.constant 8 : index
    %c0_159 = arith.constant 0 : index
    %c0_160 = arith.constant 0 : index
    %237 = vector.load %arg2[%c1_157, %c8_158, %c0_159, %c0_160] : memref<2x16x2x128xf32, #tpu.memory_space<vmem>>, vector<1x1x2x128xf32>
    %238 = vector.shape_cast %237 : vector<1x1x2x128xf32> to vector<2x128xf32>
    %239 = arith.addf %236, %238 : vector<2x128xf32>
    %c0_161 = arith.constant 0 : index
    %c8_162 = arith.constant 8 : index
    %c0_163 = arith.constant 0 : index
    %c0_164 = arith.constant 0 : index
    %240 = vector.load %arg3[%c0_161, %c8_162, %c0_163, %c0_164] : memref<3x16x16x128xf32, #tpu.memory_space<vmem>>, vector<1x1x16x128xf32>
    %241 = vector.shape_cast %240 : vector<1x1x16x128xf32> to vector<16x128xf32>
    %c1_165 = arith.constant 1 : index
    %c8_166 = arith.constant 8 : index
    %c0_167 = arith.constant 0 : index
    %c0_168 = arith.constant 0 : index
    %242 = vector.load %arg3[%c1_165, %c8_166, %c0_167, %c0_168] : memref<3x16x16x128xf32, #tpu.memory_space<vmem>>, vector<1x1x16x128xf32>
    %243 = vector.shape_cast %242 : vector<1x1x16x128xf32> to vector<16x128xf32>
    %c2_169 = arith.constant 2 : index
    %c8_170 = arith.constant 8 : index
    %c0_171 = arith.constant 0 : index
    %c0_172 = arith.constant 0 : index
    %244 = vector.load %arg3[%c2_169, %c8_170, %c0_171, %c0_172] : memref<3x16x16x128xf32, #tpu.memory_space<vmem>>, vector<1x1x16x128xf32>
    %245 = vector.shape_cast %244 : vector<1x1x16x128xf32> to vector<16x128xf32>
    %246 = vector.shape_cast %236 : vector<2x128xf32> to vector<2x1x128xf32>
    %247 = vector.shape_cast %241 : vector<16x128xf32> to vector<1x16x128xf32>
    %248 = vector.broadcast %246 : vector<2x1x128xf32> to vector<2x16x128xf32>
    %249 = vector.broadcast %247 : vector<1x16x128xf32> to vector<2x16x128xf32>
    %250 = arith.mulf %248, %249 : vector<2x16x128xf32>
    %251 = arith.addf %222, %250 : vector<2x16x128xf32>
    %252 = vector.shape_cast %238 : vector<2x128xf32> to vector<2x1x128xf32>
    %253 = vector.shape_cast %243 : vector<16x128xf32> to vector<1x16x128xf32>
    %254 = vector.broadcast %252 : vector<2x1x128xf32> to vector<2x16x128xf32>
    %255 = vector.broadcast %253 : vector<1x16x128xf32> to vector<2x16x128xf32>
    %256 = arith.mulf %254, %255 : vector<2x16x128xf32>
    %257 = arith.addf %228, %256 : vector<2x16x128xf32>
    %258 = vector.shape_cast %239 : vector<2x128xf32> to vector<2x1x128xf32>
    %259 = vector.shape_cast %245 : vector<16x128xf32> to vector<1x16x128xf32>
    %260 = vector.broadcast %258 : vector<2x1x128xf32> to vector<2x16x128xf32>
    %261 = vector.broadcast %259 : vector<1x16x128xf32> to vector<2x16x128xf32>
    %262 = arith.mulf %260, %261 : vector<2x16x128xf32>
    %263 = arith.addf %234, %262 : vector<2x16x128xf32>
    %c0_173 = arith.constant 0 : index
    %c9 = arith.constant 9 : index
    %c0_174 = arith.constant 0 : index
    %c0_175 = arith.constant 0 : index
    %264 = vector.load %arg2[%c0_173, %c9, %c0_174, %c0_175] : memref<2x16x2x128xf32, #tpu.memory_space<vmem>>, vector<1x1x2x128xf32>
    %265 = vector.shape_cast %264 : vector<1x1x2x128xf32> to vector<2x128xf32>
    %c1_176 = arith.constant 1 : index
    %c9_177 = arith.constant 9 : index
    %c0_178 = arith.constant 0 : index
    %c0_179 = arith.constant 0 : index
    %266 = vector.load %arg2[%c1_176, %c9_177, %c0_178, %c0_179] : memref<2x16x2x128xf32, #tpu.memory_space<vmem>>, vector<1x1x2x128xf32>
    %267 = vector.shape_cast %266 : vector<1x1x2x128xf32> to vector<2x128xf32>
    %268 = arith.addf %265, %267 : vector<2x128xf32>
    %c0_180 = arith.constant 0 : index
    %c9_181 = arith.constant 9 : index
    %c0_182 = arith.constant 0 : index
    %c0_183 = arith.constant 0 : index
    %269 = vector.load %arg3[%c0_180, %c9_181, %c0_182, %c0_183] : memref<3x16x16x128xf32, #tpu.memory_space<vmem>>, vector<1x1x16x128xf32>
    %270 = vector.shape_cast %269 : vector<1x1x16x128xf32> to vector<16x128xf32>
    %c1_184 = arith.constant 1 : index
    %c9_185 = arith.constant 9 : index
    %c0_186 = arith.constant 0 : index
    %c0_187 = arith.constant 0 : index
    %271 = vector.load %arg3[%c1_184, %c9_185, %c0_186, %c0_187] : memref<3x16x16x128xf32, #tpu.memory_space<vmem>>, vector<1x1x16x128xf32>
    %272 = vector.shape_cast %271 : vector<1x1x16x128xf32> to vector<16x128xf32>
    %c2_188 = arith.constant 2 : index
    %c9_189 = arith.constant 9 : index
    %c0_190 = arith.constant 0 : index
    %c0_191 = arith.constant 0 : index
    %273 = vector.load %arg3[%c2_188, %c9_189, %c0_190, %c0_191] : memref<3x16x16x128xf32, #tpu.memory_space<vmem>>, vector<1x1x16x128xf32>
    %274 = vector.shape_cast %273 : vector<1x1x16x128xf32> to vector<16x128xf32>
    %275 = vector.shape_cast %265 : vector<2x128xf32> to vector<2x1x128xf32>
    %276 = vector.shape_cast %270 : vector<16x128xf32> to vector<1x16x128xf32>
    %277 = vector.broadcast %275 : vector<2x1x128xf32> to vector<2x16x128xf32>
    %278 = vector.broadcast %276 : vector<1x16x128xf32> to vector<2x16x128xf32>
    %279 = arith.mulf %277, %278 : vector<2x16x128xf32>
    %280 = arith.addf %251, %279 : vector<2x16x128xf32>
    %281 = vector.shape_cast %267 : vector<2x128xf32> to vector<2x1x128xf32>
    %282 = vector.shape_cast %272 : vector<16x128xf32> to vector<1x16x128xf32>
    %283 = vector.broadcast %281 : vector<2x1x128xf32> to vector<2x16x128xf32>
    %284 = vector.broadcast %282 : vector<1x16x128xf32> to vector<2x16x128xf32>
    %285 = arith.mulf %283, %284 : vector<2x16x128xf32>
    %286 = arith.addf %257, %285 : vector<2x16x128xf32>
    %287 = vector.shape_cast %268 : vector<2x128xf32> to vector<2x1x128xf32>
    %288 = vector.shape_cast %274 : vector<16x128xf32> to vector<1x16x128xf32>
    %289 = vector.broadcast %287 : vector<2x1x128xf32> to vector<2x16x128xf32>
    %290 = vector.broadcast %288 : vector<1x16x128xf32> to vector<2x16x128xf32>
    %291 = arith.mulf %289, %290 : vector<2x16x128xf32>
    %292 = arith.addf %263, %291 : vector<2x16x128xf32>
    %c0_192 = arith.constant 0 : index
    %c10 = arith.constant 10 : index
    %c0_193 = arith.constant 0 : index
    %c0_194 = arith.constant 0 : index
    %293 = vector.load %arg2[%c0_192, %c10, %c0_193, %c0_194] : memref<2x16x2x128xf32, #tpu.memory_space<vmem>>, vector<1x1x2x128xf32>
    %294 = vector.shape_cast %293 : vector<1x1x2x128xf32> to vector<2x128xf32>
    %c1_195 = arith.constant 1 : index
    %c10_196 = arith.constant 10 : index
    %c0_197 = arith.constant 0 : index
    %c0_198 = arith.constant 0 : index
    %295 = vector.load %arg2[%c1_195, %c10_196, %c0_197, %c0_198] : memref<2x16x2x128xf32, #tpu.memory_space<vmem>>, vector<1x1x2x128xf32>
    %296 = vector.shape_cast %295 : vector<1x1x2x128xf32> to vector<2x128xf32>
    %297 = arith.addf %294, %296 : vector<2x128xf32>
    %c0_199 = arith.constant 0 : index
    %c10_200 = arith.constant 10 : index
    %c0_201 = arith.constant 0 : index
    %c0_202 = arith.constant 0 : index
    %298 = vector.load %arg3[%c0_199, %c10_200, %c0_201, %c0_202] : memref<3x16x16x128xf32, #tpu.memory_space<vmem>>, vector<1x1x16x128xf32>
    %299 = vector.shape_cast %298 : vector<1x1x16x128xf32> to vector<16x128xf32>
    %c1_203 = arith.constant 1 : index
    %c10_204 = arith.constant 10 : index
    %c0_205 = arith.constant 0 : index
    %c0_206 = arith.constant 0 : index
    %300 = vector.load %arg3[%c1_203, %c10_204, %c0_205, %c0_206] : memref<3x16x16x128xf32, #tpu.memory_space<vmem>>, vector<1x1x16x128xf32>
    %301 = vector.shape_cast %300 : vector<1x1x16x128xf32> to vector<16x128xf32>
    %c2_207 = arith.constant 2 : index
    %c10_208 = arith.constant 10 : index
    %c0_209 = arith.constant 0 : index
    %c0_210 = arith.constant 0 : index
    %302 = vector.load %arg3[%c2_207, %c10_208, %c0_209, %c0_210] : memref<3x16x16x128xf32, #tpu.memory_space<vmem>>, vector<1x1x16x128xf32>
    %303 = vector.shape_cast %302 : vector<1x1x16x128xf32> to vector<16x128xf32>
    %304 = vector.shape_cast %294 : vector<2x128xf32> to vector<2x1x128xf32>
    %305 = vector.shape_cast %299 : vector<16x128xf32> to vector<1x16x128xf32>
    %306 = vector.broadcast %304 : vector<2x1x128xf32> to vector<2x16x128xf32>
    %307 = vector.broadcast %305 : vector<1x16x128xf32> to vector<2x16x128xf32>
    %308 = arith.mulf %306, %307 : vector<2x16x128xf32>
    %309 = arith.addf %280, %308 : vector<2x16x128xf32>
    %310 = vector.shape_cast %296 : vector<2x128xf32> to vector<2x1x128xf32>
    %311 = vector.shape_cast %301 : vector<16x128xf32> to vector<1x16x128xf32>
    %312 = vector.broadcast %310 : vector<2x1x128xf32> to vector<2x16x128xf32>
    %313 = vector.broadcast %311 : vector<1x16x128xf32> to vector<2x16x128xf32>
    %314 = arith.mulf %312, %313 : vector<2x16x128xf32>
    %315 = arith.addf %286, %314 : vector<2x16x128xf32>
    %316 = vector.shape_cast %297 : vector<2x128xf32> to vector<2x1x128xf32>
    %317 = vector.shape_cast %303 : vector<16x128xf32> to vector<1x16x128xf32>
    %318 = vector.broadcast %316 : vector<2x1x128xf32> to vector<2x16x128xf32>
    %319 = vector.broadcast %317 : vector<1x16x128xf32> to vector<2x16x128xf32>
    %320 = arith.mulf %318, %319 : vector<2x16x128xf32>
    %321 = arith.addf %292, %320 : vector<2x16x128xf32>
    %c0_211 = arith.constant 0 : index
    %c11 = arith.constant 11 : index
    %c0_212 = arith.constant 0 : index
    %c0_213 = arith.constant 0 : index
    %322 = vector.load %arg2[%c0_211, %c11, %c0_212, %c0_213] : memref<2x16x2x128xf32, #tpu.memory_space<vmem>>, vector<1x1x2x128xf32>
    %323 = vector.shape_cast %322 : vector<1x1x2x128xf32> to vector<2x128xf32>
    %c1_214 = arith.constant 1 : index
    %c11_215 = arith.constant 11 : index
    %c0_216 = arith.constant 0 : index
    %c0_217 = arith.constant 0 : index
    %324 = vector.load %arg2[%c1_214, %c11_215, %c0_216, %c0_217] : memref<2x16x2x128xf32, #tpu.memory_space<vmem>>, vector<1x1x2x128xf32>
    %325 = vector.shape_cast %324 : vector<1x1x2x128xf32> to vector<2x128xf32>
    %326 = arith.addf %323, %325 : vector<2x128xf32>
    %c0_218 = arith.constant 0 : index
    %c11_219 = arith.constant 11 : index
    %c0_220 = arith.constant 0 : index
    %c0_221 = arith.constant 0 : index
    %327 = vector.load %arg3[%c0_218, %c11_219, %c0_220, %c0_221] : memref<3x16x16x128xf32, #tpu.memory_space<vmem>>, vector<1x1x16x128xf32>
    %328 = vector.shape_cast %327 : vector<1x1x16x128xf32> to vector<16x128xf32>
    %c1_222 = arith.constant 1 : index
    %c11_223 = arith.constant 11 : index
    %c0_224 = arith.constant 0 : index
    %c0_225 = arith.constant 0 : index
    %329 = vector.load %arg3[%c1_222, %c11_223, %c0_224, %c0_225] : memref<3x16x16x128xf32, #tpu.memory_space<vmem>>, vector<1x1x16x128xf32>
    %330 = vector.shape_cast %329 : vector<1x1x16x128xf32> to vector<16x128xf32>
    %c2_226 = arith.constant 2 : index
    %c11_227 = arith.constant 11 : index
    %c0_228 = arith.constant 0 : index
    %c0_229 = arith.constant 0 : index
    %331 = vector.load %arg3[%c2_226, %c11_227, %c0_228, %c0_229] : memref<3x16x16x128xf32, #tpu.memory_space<vmem>>, vector<1x1x16x128xf32>
    %332 = vector.shape_cast %331 : vector<1x1x16x128xf32> to vector<16x128xf32>
    %333 = vector.shape_cast %323 : vector<2x128xf32> to vector<2x1x128xf32>
    %334 = vector.shape_cast %328 : vector<16x128xf32> to vector<1x16x128xf32>
    %335 = vector.broadcast %333 : vector<2x1x128xf32> to vector<2x16x128xf32>
    %336 = vector.broadcast %334 : vector<1x16x128xf32> to vector<2x16x128xf32>
    %337 = arith.mulf %335, %336 : vector<2x16x128xf32>
    %338 = arith.addf %309, %337 : vector<2x16x128xf32>
    %339 = vector.shape_cast %325 : vector<2x128xf32> to vector<2x1x128xf32>
    %340 = vector.shape_cast %330 : vector<16x128xf32> to vector<1x16x128xf32>
    %341 = vector.broadcast %339 : vector<2x1x128xf32> to vector<2x16x128xf32>
    %342 = vector.broadcast %340 : vector<1x16x128xf32> to vector<2x16x128xf32>
    %343 = arith.mulf %341, %342 : vector<2x16x128xf32>
    %344 = arith.addf %315, %343 : vector<2x16x128xf32>
    %345 = vector.shape_cast %326 : vector<2x128xf32> to vector<2x1x128xf32>
    %346 = vector.shape_cast %332 : vector<16x128xf32> to vector<1x16x128xf32>
    %347 = vector.broadcast %345 : vector<2x1x128xf32> to vector<2x16x128xf32>
    %348 = vector.broadcast %346 : vector<1x16x128xf32> to vector<2x16x128xf32>
    %349 = arith.mulf %347, %348 : vector<2x16x128xf32>
    %350 = arith.addf %321, %349 : vector<2x16x128xf32>
    %c0_230 = arith.constant 0 : index
    %c12 = arith.constant 12 : index
    %c0_231 = arith.constant 0 : index
    %c0_232 = arith.constant 0 : index
    %351 = vector.load %arg2[%c0_230, %c12, %c0_231, %c0_232] : memref<2x16x2x128xf32, #tpu.memory_space<vmem>>, vector<1x1x2x128xf32>
    %352 = vector.shape_cast %351 : vector<1x1x2x128xf32> to vector<2x128xf32>
    %c1_233 = arith.constant 1 : index
    %c12_234 = arith.constant 12 : index
    %c0_235 = arith.constant 0 : index
    %c0_236 = arith.constant 0 : index
    %353 = vector.load %arg2[%c1_233, %c12_234, %c0_235, %c0_236] : memref<2x16x2x128xf32, #tpu.memory_space<vmem>>, vector<1x1x2x128xf32>
    %354 = vector.shape_cast %353 : vector<1x1x2x128xf32> to vector<2x128xf32>
    %355 = arith.addf %352, %354 : vector<2x128xf32>
    %c0_237 = arith.constant 0 : index
    %c12_238 = arith.constant 12 : index
    %c0_239 = arith.constant 0 : index
    %c0_240 = arith.constant 0 : index
    %356 = vector.load %arg3[%c0_237, %c12_238, %c0_239, %c0_240] : memref<3x16x16x128xf32, #tpu.memory_space<vmem>>, vector<1x1x16x128xf32>
    %357 = vector.shape_cast %356 : vector<1x1x16x128xf32> to vector<16x128xf32>
    %c1_241 = arith.constant 1 : index
    %c12_242 = arith.constant 12 : index
    %c0_243 = arith.constant 0 : index
    %c0_244 = arith.constant 0 : index
    %358 = vector.load %arg3[%c1_241, %c12_242, %c0_243, %c0_244] : memref<3x16x16x128xf32, #tpu.memory_space<vmem>>, vector<1x1x16x128xf32>
    %359 = vector.shape_cast %358 : vector<1x1x16x128xf32> to vector<16x128xf32>
    %c2_245 = arith.constant 2 : index
    %c12_246 = arith.constant 12 : index
    %c0_247 = arith.constant 0 : index
    %c0_248 = arith.constant 0 : index
    %360 = vector.load %arg3[%c2_245, %c12_246, %c0_247, %c0_248] : memref<3x16x16x128xf32, #tpu.memory_space<vmem>>, vector<1x1x16x128xf32>
    %361 = vector.shape_cast %360 : vector<1x1x16x128xf32> to vector<16x128xf32>
    %362 = vector.shape_cast %352 : vector<2x128xf32> to vector<2x1x128xf32>
    %363 = vector.shape_cast %357 : vector<16x128xf32> to vector<1x16x128xf32>
    %364 = vector.broadcast %362 : vector<2x1x128xf32> to vector<2x16x128xf32>
    %365 = vector.broadcast %363 : vector<1x16x128xf32> to vector<2x16x128xf32>
    %366 = arith.mulf %364, %365 : vector<2x16x128xf32>
    %367 = arith.addf %338, %366 : vector<2x16x128xf32>
    %368 = vector.shape_cast %354 : vector<2x128xf32> to vector<2x1x128xf32>
    %369 = vector.shape_cast %359 : vector<16x128xf32> to vector<1x16x128xf32>
    %370 = vector.broadcast %368 : vector<2x1x128xf32> to vector<2x16x128xf32>
    %371 = vector.broadcast %369 : vector<1x16x128xf32> to vector<2x16x128xf32>
    %372 = arith.mulf %370, %371 : vector<2x16x128xf32>
    %373 = arith.addf %344, %372 : vector<2x16x128xf32>
    %374 = vector.shape_cast %355 : vector<2x128xf32> to vector<2x1x128xf32>
    %375 = vector.shape_cast %361 : vector<16x128xf32> to vector<1x16x128xf32>
    %376 = vector.broadcast %374 : vector<2x1x128xf32> to vector<2x16x128xf32>
    %377 = vector.broadcast %375 : vector<1x16x128xf32> to vector<2x16x128xf32>
    %378 = arith.mulf %376, %377 : vector<2x16x128xf32>
    %379 = arith.addf %350, %378 : vector<2x16x128xf32>
    %c0_249 = arith.constant 0 : index
    %c13 = arith.constant 13 : index
    %c0_250 = arith.constant 0 : index
    %c0_251 = arith.constant 0 : index
    %380 = vector.load %arg2[%c0_249, %c13, %c0_250, %c0_251] : memref<2x16x2x128xf32, #tpu.memory_space<vmem>>, vector<1x1x2x128xf32>
    %381 = vector.shape_cast %380 : vector<1x1x2x128xf32> to vector<2x128xf32>
    %c1_252 = arith.constant 1 : index
    %c13_253 = arith.constant 13 : index
    %c0_254 = arith.constant 0 : index
    %c0_255 = arith.constant 0 : index
    %382 = vector.load %arg2[%c1_252, %c13_253, %c0_254, %c0_255] : memref<2x16x2x128xf32, #tpu.memory_space<vmem>>, vector<1x1x2x128xf32>
    %383 = vector.shape_cast %382 : vector<1x1x2x128xf32> to vector<2x128xf32>
    %384 = arith.addf %381, %383 : vector<2x128xf32>
    %c0_256 = arith.constant 0 : index
    %c13_257 = arith.constant 13 : index
    %c0_258 = arith.constant 0 : index
    %c0_259 = arith.constant 0 : index
    %385 = vector.load %arg3[%c0_256, %c13_257, %c0_258, %c0_259] : memref<3x16x16x128xf32, #tpu.memory_space<vmem>>, vector<1x1x16x128xf32>
    %386 = vector.shape_cast %385 : vector<1x1x16x128xf32> to vector<16x128xf32>
    %c1_260 = arith.constant 1 : index
    %c13_261 = arith.constant 13 : index
    %c0_262 = arith.constant 0 : index
    %c0_263 = arith.constant 0 : index
    %387 = vector.load %arg3[%c1_260, %c13_261, %c0_262, %c0_263] : memref<3x16x16x128xf32, #tpu.memory_space<vmem>>, vector<1x1x16x128xf32>
    %388 = vector.shape_cast %387 : vector<1x1x16x128xf32> to vector<16x128xf32>
    %c2_264 = arith.constant 2 : index
    %c13_265 = arith.constant 13 : index
    %c0_266 = arith.constant 0 : index
    %c0_267 = arith.constant 0 : index
    %389 = vector.load %arg3[%c2_264, %c13_265, %c0_266, %c0_267] : memref<3x16x16x128xf32, #tpu.memory_space<vmem>>, vector<1x1x16x128xf32>
    %390 = vector.shape_cast %389 : vector<1x1x16x128xf32> to vector<16x128xf32>
    %391 = vector.shape_cast %381 : vector<2x128xf32> to vector<2x1x128xf32>
    %392 = vector.shape_cast %386 : vector<16x128xf32> to vector<1x16x128xf32>
    %393 = vector.broadcast %391 : vector<2x1x128xf32> to vector<2x16x128xf32>
    %394 = vector.broadcast %392 : vector<1x16x128xf32> to vector<2x16x128xf32>
    %395 = arith.mulf %393, %394 : vector<2x16x128xf32>
    %396 = arith.addf %367, %395 : vector<2x16x128xf32>
    %397 = vector.shape_cast %383 : vector<2x128xf32> to vector<2x1x128xf32>
    %398 = vector.shape_cast %388 : vector<16x128xf32> to vector<1x16x128xf32>
    %399 = vector.broadcast %397 : vector<2x1x128xf32> to vector<2x16x128xf32>
    %400 = vector.broadcast %398 : vector<1x16x128xf32> to vector<2x16x128xf32>
    %401 = arith.mulf %399, %400 : vector<2x16x128xf32>
    %402 = arith.addf %373, %401 : vector<2x16x128xf32>
    %403 = vector.shape_cast %384 : vector<2x128xf32> to vector<2x1x128xf32>
    %404 = vector.shape_cast %390 : vector<16x128xf32> to vector<1x16x128xf32>
    %405 = vector.broadcast %403 : vector<2x1x128xf32> to vector<2x16x128xf32>
    %406 = vector.broadcast %404 : vector<1x16x128xf32> to vector<2x16x128xf32>
    %407 = arith.mulf %405, %406 : vector<2x16x128xf32>
    %408 = arith.addf %379, %407 : vector<2x16x128xf32>
    %c0_268 = arith.constant 0 : index
    %c14 = arith.constant 14 : index
    %c0_269 = arith.constant 0 : index
    %c0_270 = arith.constant 0 : index
    %409 = vector.load %arg2[%c0_268, %c14, %c0_269, %c0_270] : memref<2x16x2x128xf32, #tpu.memory_space<vmem>>, vector<1x1x2x128xf32>
    %410 = vector.shape_cast %409 : vector<1x1x2x128xf32> to vector<2x128xf32>
    %c1_271 = arith.constant 1 : index
    %c14_272 = arith.constant 14 : index
    %c0_273 = arith.constant 0 : index
    %c0_274 = arith.constant 0 : index
    %411 = vector.load %arg2[%c1_271, %c14_272, %c0_273, %c0_274] : memref<2x16x2x128xf32, #tpu.memory_space<vmem>>, vector<1x1x2x128xf32>
    %412 = vector.shape_cast %411 : vector<1x1x2x128xf32> to vector<2x128xf32>
    %413 = arith.addf %410, %412 : vector<2x128xf32>
    %c0_275 = arith.constant 0 : index
    %c14_276 = arith.constant 14 : index
    %c0_277 = arith.constant 0 : index
    %c0_278 = arith.constant 0 : index
    %414 = vector.load %arg3[%c0_275, %c14_276, %c0_277, %c0_278] : memref<3x16x16x128xf32, #tpu.memory_space<vmem>>, vector<1x1x16x128xf32>
    %415 = vector.shape_cast %414 : vector<1x1x16x128xf32> to vector<16x128xf32>
    %c1_279 = arith.constant 1 : index
    %c14_280 = arith.constant 14 : index
    %c0_281 = arith.constant 0 : index
    %c0_282 = arith.constant 0 : index
    %416 = vector.load %arg3[%c1_279, %c14_280, %c0_281, %c0_282] : memref<3x16x16x128xf32, #tpu.memory_space<vmem>>, vector<1x1x16x128xf32>
    %417 = vector.shape_cast %416 : vector<1x1x16x128xf32> to vector<16x128xf32>
    %c2_283 = arith.constant 2 : index
    %c14_284 = arith.constant 14 : index
    %c0_285 = arith.constant 0 : index
    %c0_286 = arith.constant 0 : index
    %418 = vector.load %arg3[%c2_283, %c14_284, %c0_285, %c0_286] : memref<3x16x16x128xf32, #tpu.memory_space<vmem>>, vector<1x1x16x128xf32>
    %419 = vector.shape_cast %418 : vector<1x1x16x128xf32> to vector<16x128xf32>
    %420 = vector.shape_cast %410 : vector<2x128xf32> to vector<2x1x128xf32>
    %421 = vector.shape_cast %415 : vector<16x128xf32> to vector<1x16x128xf32>
    %422 = vector.broadcast %420 : vector<2x1x128xf32> to vector<2x16x128xf32>
    %423 = vector.broadcast %421 : vector<1x16x128xf32> to vector<2x16x128xf32>
    %424 = arith.mulf %422, %423 : vector<2x16x128xf32>
    %425 = arith.addf %396, %424 : vector<2x16x128xf32>
    %426 = vector.shape_cast %412 : vector<2x128xf32> to vector<2x1x128xf32>
    %427 = vector.shape_cast %417 : vector<16x128xf32> to vector<1x16x128xf32>
    %428 = vector.broadcast %426 : vector<2x1x128xf32> to vector<2x16x128xf32>
    %429 = vector.broadcast %427 : vector<1x16x128xf32> to vector<2x16x128xf32>
    %430 = arith.mulf %428, %429 : vector<2x16x128xf32>
    %431 = arith.addf %402, %430 : vector<2x16x128xf32>
    %432 = vector.shape_cast %413 : vector<2x128xf32> to vector<2x1x128xf32>
    %433 = vector.shape_cast %419 : vector<16x128xf32> to vector<1x16x128xf32>
    %434 = vector.broadcast %432 : vector<2x1x128xf32> to vector<2x16x128xf32>
    %435 = vector.broadcast %433 : vector<1x16x128xf32> to vector<2x16x128xf32>
    %436 = arith.mulf %434, %435 : vector<2x16x128xf32>
    %437 = arith.addf %408, %436 : vector<2x16x128xf32>
    %c0_287 = arith.constant 0 : index
    %c15 = arith.constant 15 : index
    %c0_288 = arith.constant 0 : index
    %c0_289 = arith.constant 0 : index
    %438 = vector.load %arg2[%c0_287, %c15, %c0_288, %c0_289] : memref<2x16x2x128xf32, #tpu.memory_space<vmem>>, vector<1x1x2x128xf32>
    %439 = vector.shape_cast %438 : vector<1x1x2x128xf32> to vector<2x128xf32>
    %c1_290 = arith.constant 1 : index
    %c15_291 = arith.constant 15 : index
    %c0_292 = arith.constant 0 : index
    %c0_293 = arith.constant 0 : index
    %440 = vector.load %arg2[%c1_290, %c15_291, %c0_292, %c0_293] : memref<2x16x2x128xf32, #tpu.memory_space<vmem>>, vector<1x1x2x128xf32>
    %441 = vector.shape_cast %440 : vector<1x1x2x128xf32> to vector<2x128xf32>
    %442 = arith.addf %439, %441 : vector<2x128xf32>
    %c0_294 = arith.constant 0 : index
    %c15_295 = arith.constant 15 : index
    %c0_296 = arith.constant 0 : index
    %c0_297 = arith.constant 0 : index
    %443 = vector.load %arg3[%c0_294, %c15_295, %c0_296, %c0_297] : memref<3x16x16x128xf32, #tpu.memory_space<vmem>>, vector<1x1x16x128xf32>
    %444 = vector.shape_cast %443 : vector<1x1x16x128xf32> to vector<16x128xf32>
    %c1_298 = arith.constant 1 : index
    %c15_299 = arith.constant 15 : index
    %c0_300 = arith.constant 0 : index
    %c0_301 = arith.constant 0 : index
    %445 = vector.load %arg3[%c1_298, %c15_299, %c0_300, %c0_301] : memref<3x16x16x128xf32, #tpu.memory_space<vmem>>, vector<1x1x16x128xf32>
    %446 = vector.shape_cast %445 : vector<1x1x16x128xf32> to vector<16x128xf32>
    %c2_302 = arith.constant 2 : index
    %c15_303 = arith.constant 15 : index
    %c0_304 = arith.constant 0 : index
    %c0_305 = arith.constant 0 : index
    %447 = vector.load %arg3[%c2_302, %c15_303, %c0_304, %c0_305] : memref<3x16x16x128xf32, #tpu.memory_space<vmem>>, vector<1x1x16x128xf32>
    %448 = vector.shape_cast %447 : vector<1x1x16x128xf32> to vector<16x128xf32>
    %449 = vector.shape_cast %439 : vector<2x128xf32> to vector<2x1x128xf32>
    %450 = vector.shape_cast %444 : vector<16x128xf32> to vector<1x16x128xf32>
    %451 = vector.broadcast %449 : vector<2x1x128xf32> to vector<2x16x128xf32>
    %452 = vector.broadcast %450 : vector<1x16x128xf32> to vector<2x16x128xf32>
    %453 = arith.mulf %451, %452 : vector<2x16x128xf32>
    %454 = arith.addf %425, %453 : vector<2x16x128xf32>
    %455 = vector.shape_cast %441 : vector<2x128xf32> to vector<2x1x128xf32>
    %456 = vector.shape_cast %446 : vector<16x128xf32> to vector<1x16x128xf32>
    %457 = vector.broadcast %455 : vector<2x1x128xf32> to vector<2x16x128xf32>
    %458 = vector.broadcast %456 : vector<1x16x128xf32> to vector<2x16x128xf32>
    %459 = arith.mulf %457, %458 : vector<2x16x128xf32>
    %460 = arith.addf %431, %459 : vector<2x16x128xf32>
    %461 = vector.shape_cast %442 : vector<2x128xf32> to vector<2x1x128xf32>
    %462 = vector.shape_cast %448 : vector<16x128xf32> to vector<1x16x128xf32>
    %463 = vector.broadcast %461 : vector<2x1x128xf32> to vector<2x16x128xf32>
    %464 = vector.broadcast %462 : vector<1x16x128xf32> to vector<2x16x128xf32>
    %465 = arith.mulf %463, %464 : vector<2x16x128xf32>
    %466 = arith.addf %437, %465 : vector<2x16x128xf32>
    %467 = arith.subf %454, %460 : vector<2x16x128xf32>
    %c0_306 = arith.constant 0 : index
    %c0_307 = arith.constant 0 : index
    %c0_308 = arith.constant 0 : index
    %c0_309 = arith.constant 0 : index
    %468 = vector.load %arg4[%c0_306, %c0_307, %c0_308, %c0_309] : memref<2x2x16x128xf32, #tpu.memory_space<vmem>>, vector<1x2x16x128xf32>
    %469 = vector.shape_cast %468 : vector<1x2x16x128xf32> to vector<2x16x128xf32>
    %470 = vector.shape_cast %467 : vector<2x16x128xf32> to vector<1x2x16x128xf32>
    tpu.vector_store %arg4[%c0_306, %c0_307, %c0_308, %c0_309], %470 {strides = array<i32>} : memref<2x2x16x128xf32, #tpu.memory_space<vmem>>, vector<1x2x16x128xf32>,
    %471 = arith.subf %466, %454 : vector<2x16x128xf32>
    %472 = arith.subf %471, %460 : vector<2x16x128xf32>
    %c1_310 = arith.constant 1 : index
    %c0_311 = arith.constant 0 : index
    %c0_312 = arith.constant 0 : index
    %c0_313 = arith.constant 0 : index
    %473 = vector.load %arg4[%c1_310, %c0_311, %c0_312, %c0_313] : memref<2x2x16x128xf32, #tpu.memory_space<vmem>>, vector<1x2x16x128xf32>
    %474 = vector.shape_cast %473 : vector<1x2x16x128xf32> to vector<2x16x128xf32>
    %475 = vector.shape_cast %472 : vector<2x16x128xf32> to vector<1x2x16x128xf32>
    tpu.vector_store %arg4[%c1_310, %c0_311, %c0_312, %c0_313], %475 {strides = array<i32>} : memref<2x2x16x128xf32, #tpu.memory_space<vmem>>, vector<1x2x16x128xf32>,
    return
  }
  func.func @transform_0(%arg0: i32, %arg1: i32) -> (i32, i32, i32, i32) {
    %c0_i32 = arith.constant 0 : i32
    %c0_i32_0 = arith.constant 0 : i32
    %c0_i32_1 = arith.constant 0 : i32
    %c0_i32_2 = arith.constant 0 : i32
    return %c0_i32, %c0_i32_0, %arg0, %c0_i32_1 : i32, i32, i32, i32
  }
  func.func @transform_1(%arg0: i32, %arg1: i32) -> (i32, i32, i32, i32) {
    %c0_i32 = arith.constant 0 : i32
    %c0_i32_0 = arith.constant 0 : i32
    %c0_i32_1 = arith.constant 0 : i32
    %c0_i32_2 = arith.constant 0 : i32
    return %c0_i32, %c0_i32_0, %arg1, %c0_i32_1 : i32, i32, i32, i32
  }
  func.func @transform_2(%arg0: i32, %arg1: i32) -> (i32, i32, i32, i32) {
    %c0_i32 = arith.constant 0 : i32
    %c0_i32_0 = arith.constant 0 : i32
    %c0_i32_1 = arith.constant 0 : i32
    return %c0_i32, %arg0, %arg1, %c0_i32_0 : i32, i32, i32, i32
  }
}

</mosaic_0001>

<llo_original>
// kernel: custom-call
$region0: #{custom-call}
  %s0 = inlined_call_operand.hbm [shape: c64[16,16,4,4], index: 0, kind: input, shape index: {}]
  %s1 = inlined_call_operand.vmem [shape: f32[16,16,4,4], index: 1, kind: output, shape index: {}]
  $region1: #{custom-call} parent=0
    #allocation0 [shape = 's32[1]{0}', space=sflag, size = 0x4, scoped, tag = 'scoped memory for custom-call']
    %2 = vsyncpa [#allocation0], 0
    %s3 = sshll.u32 %s1, 4
    %s4 = int_to_ptr.vmem [resolvable:$true] %s3
    %6 = dma.hbm_to_vmem [thread:$0]  %s0, 4096, %s4, [#allocation0]
    %7 = dma.done [#allocation0], 4096
    %8 = vsyncpa [#allocation0], 1

// kernel: custom-call.1
$region0: #{custom-call.1}
  %s0 = inlined_call_operand.hbm [shape: c64[16,16,4,4], index: 0, kind: input, shape index: {}]
  %s1 = inlined_call_operand.vmem [shape: f32[16,16,4,4], index: 1, kind: output, shape index: {}]
  %s2 = scalar_lea.hbm %s0, 4096
  $region1: #{custom-call.1} parent=0
    #allocation0 [shape = 's32[1]{0}', space=sflag, size = 0x4, scoped, tag = 'scoped memory for custom-call.1']
    %3 = vsyncpa [#allocation0], 0
    %s4 = sshll.u32 %s1, 4
    %s5 = int_to_ptr.vmem [resolvable:$true] %s4
    %7 = dma.hbm_to_vmem [thread:$0]  %s2, 4096, %s5, [#allocation0]
    %8 = dma.done [#allocation0], 4096
    %9 = vsyncpa [#allocation0], 1

// kernel: reverse.6
$region0: #{reverse.6}
  #allocation0 [shape = 's32[1]{0}', space=sflag, size = 0x4, scoped, tag = 'scoped memory for reverse.6']
  %s0 = inlined_call_operand.vmem [shape: f32[2,16,16,7], index: 0, kind: input, shape index: {}]
  %s1 = inlined_call_operand.vmem [shape: f32[2,16,16,7], index: 1, kind: output, shape index: {}]
  %s2 = scalar_lea.vmem %s0, 96
  %v3 = vld [vmem:[%s2] sm:$0xff]
  %4 = vst [vmem:[%s1] sm:$0xff] %v3
  %s5 = scalar_lea.vmem %s0, 208
  %v6 = vld [vmem:[%s5] sm:$0xff]
  %s7 = scalar_lea.vmem %s1, 112
  %8 = vst [vmem:[%s7] sm:$0xff] %v6
  %s9 = scalar_lea.vmem %s0, 80
  %v10 = vld [vmem:[%s9] sm:$0xff]
  %s11 = scalar_lea.vmem %s1, 16
  %12 = vst [vmem:[%s11] sm:$0xff] %v10
  %s13 = scalar_lea.vmem %s0, 192
  %v14 = vld [vmem:[%s13] sm:$0xff]
  %s15 = scalar_lea.vmem %s1, 128
  %16 = vst [vmem:[%s15] sm:$0xff] %v14
  %s17 = scalar_lea.vmem %s0, 64
  %v18 = vld [vmem:[%s17] sm:$0xff]
  %s19 = scalar_lea.vmem %s1, 32
  %20 = vst [vmem:[%s19] sm:$0xff] %v18
  %s21 = scalar_lea.vmem %s0, 176
  %v22 = vld [vmem:[%s21] sm:$0xff]
  %s23 = scalar_lea.vmem %s1, 144
  %24 = vst [vmem:[%s23] sm:$0xff] %v22
  %s25 = scalar_lea.vmem %s0, 48
  %v26 = vld [vmem:[%s25] sm:$0xff]
  %s27 = scalar_lea.vmem %s1, 48
  %28 = vst [vmem:[%s27] sm:$0xff] %v26
  %s29 = scalar_lea.vmem %s0, 160
  %v30 = vld [vmem:[%s29] sm:$0xff]
  %s31 = scalar_lea.vmem %s1, 160
  %32 = vst [vmem:[%s31] sm:$0xff] %v30
  %s33 = scalar_lea.vmem %s0, 32
  %v34 = vld [vmem:[%s33] sm:$0xff]
  %s35 = scalar_lea.vmem %s1, 64
  %36 = vst [vmem:[%s35] sm:$0xff] %v34
  %s37 = scalar_lea.vmem %s0, 144
  %v38 = vld [vmem:[%s37] sm:$0xff]
  %s39 = scalar_lea.vmem %s1, 176
  %40 = vst [vmem:[%s39] sm:$0xff] %v38
  %s41 = scalar_lea.vmem %s0, 16
  %v42 = vld [vmem:[%s41] sm:$0xff]
  %s43 = scalar_lea.vmem %s1, 80
  %44 = vst [vmem:[%s43] sm:$0xff] %v42
  %s45 = scalar_lea.vmem %s0, 128
  %v46 = vld [vmem:[%s45] sm:$0xff]
  %s47 = scalar_lea.vmem %s1, 192
  %48 = vst [vmem:[%s47] sm:$0xff] %v46
  %v49 = vld [vmem:[%s0] sm:$0xff]
  %s50 = scalar_lea.vmem %s1, 96
  %51 = vst [vmem:[%s50] sm:$0xff] %v49
  %s52 = scalar_lea.vmem %s0, 112
  %v53 = vld [vmem:[%s52] sm:$0xff]
  %s54 = scalar_lea.vmem %s1, 208
  %55 = vst [vmem:[%s54] sm:$0xff] %v53
  %s56 = scalar_lea.vmem %s0, 104
  %v57 = vld [vmem:[%s56] sm:$0xff]
  %s58 = scalar_lea.vmem %s1, 8
  %59 = vst [vmem:[%s58] sm:$0xff] %v57
  %s60 = scalar_lea.vmem %s0, 216
  %v61 = vld [vmem:[%s60] sm:$0xff]
  %s62 = scalar_lea.vmem %s1, 120
  %63 = vst [vmem:[%s62] sm:$0xff] %v61
  %s64 = scalar_lea.vmem %s0, 88
  %v65 = vld [vmem:[%s64] sm:$0xff]
  %s66 = scalar_lea.vmem %s1, 24
  %67 = vst [vmem:[%s66] sm:$0xff] %v65
  %s68 = scalar_lea.vmem %s0, 200
  %v69 = vld [vmem:[%s68] sm:$0xff]
  %s70 = scalar_lea.vmem %s1, 136
  %71 = vst [vmem:[%s70] sm:$0xff] %v69
  %s72 = scalar_lea.vmem %s0, 72
  %v73 = vld [vmem:[%s72] sm:$0xff]
  %s74 = scalar_lea.vmem %s1, 40
  %75 = vst [vmem:[%s74] sm:$0xff] %v73
  %s76 = scalar_lea.vmem %s0, 184
  %v77 = vld [vmem:[%s76] sm:$0xff]
  %s78 = scalar_lea.vmem %s1, 152
  %79 = vst [vmem:[%s78] sm:$0xff] %v77
  %s80 = scalar_lea.vmem %s0, 56
  %v81 = vld [vmem:[%s80] sm:$0xff]
  %s82 = scalar_lea.vmem %s1, 56
  %83 = vst [vmem:[%s82] sm:$0xff] %v81
  %s84 = scalar_lea.vmem %s0, 168
  %v85 = vld [vmem:[%s84] sm:$0xff]
  %s86 = scalar_lea.vmem %s1, 168
  %87 = vst [vmem:[%s86] sm:$0xff] %v85
  %s88 = scalar_lea.vmem %s0, 40
  %v89 = vld [vmem:[%s88] sm:$0xff]
  %s90 = scalar_lea.vmem %s1, 72
  %91 = vst [vmem:[%s90] sm:$0xff] %v89
  %s92 = scalar_lea.vmem %s0, 152
  %v93 = vld [vmem:[%s92] sm:$0xff]
  %s94 = scalar_lea.vmem %s1, 184
  %95 = vst [vmem:[%s94] sm:$0xff] %v93
  %s96 = scalar_lea.vmem %s0, 24
  %v97 = vld [vmem:[%s96] sm:$0xff]
  %s98 = scalar_lea.vmem %s1, 88
  %99 = vst [vmem:[%s98] sm:$0xff] %v97
  %s100 = scalar_lea.vmem %s0, 136
  %v101 = vld [vmem:[%s100] sm:$0xff]
  %s102 = scalar_lea.vmem %s1, 200
  %103 = vst [vmem:[%s102] sm:$0xff] %v101
  %s104 = scalar_lea.vmem %s0, 8
  %v105 = vld [vmem:[%s104] sm:$0xff]
  %s106 = scalar_lea.vmem %s1, 104
  %107 = vst [vmem:[%s106] sm:$0xff] %v105
  %s108 = scalar_lea.vmem %s0, 120
  %v109 = vld [vmem:[%s108] sm:$0xff]
  %s110 = scalar_lea.vmem %s1, 216
  %111 = vst [vmem:[%s110] sm:$0xff] %v109

// kernel: fno2d_forward.3
$region0: #{fno2d_forward.3}
  #allocation0 [shape = 'u32[]', space=smem, size = 0x4, offset = 0x4, fixed_abs, tag = 'smem constant byte address 0x4 - core index']
  #allocation1 [shape = 'u32[144,128]{1,0:T(1,128)}', space=vmem, size = 0x12000, scoped, tag = 'internal scratch']
  %s0 = inlined_call_operand.vmem [shape: f32[2,16,2,128], index: 0, kind: input, shape index: {}]
  %s1 = inlined_call_operand.vmem [shape: f32[3,16,16,128], index: 1, kind: input, shape index: {}]
  %s2 = inlined_call_operand.vmem [shape: f32[2,2,16,128], index: 2, kind: output, shape index: {}]
  %s3 = sld [smem:[#allocation0]]
  $region18: #{fno2d_forward.3} parent=0
    _
  %s5 = ssub.s32 1, %s3
  %s6 = scalar_select 0, %s5, %s3
  // Predicated region
  $region2: #{fno2d_forward.3} parent=0 // pred_check
    _
  $region3: #{fno2d_forward.3} parent=0 // pred_check_branch
    %8 = sbr.rel (0) target = $region5
  $region4: #{fno2d_forward.3} parent=0 // pred_region
    _
  $region5: #{fno2d_forward.3} parent=0 // pred_fallthru
    _
  // Predicated region
  $region6: #{fno2d_forward.3} parent=0 // pred_check
    _
  $region7: #{fno2d_forward.3} parent=0 // pred_check_branch
    %10 = sbr.rel (0) target = $region9
  $region8: #{fno2d_forward.3} parent=0 // pred_region
    _
  $region9: #{fno2d_forward.3} parent=0 // pred_fallthru
    _
  %v11 = vld [vmem:[%s0] sm:$0x3]
  %s12 = scalar_lea.vmem %s0, 32
  %v13 = vld [vmem:[%s12] sm:$0x3]
  %v14 = vadd.f32 %v11, %v13
  %v15 = vld [vmem:[%s1] sm:$0xff]
  %v16 = vld [vmem:[%s1 + $0x8] sm:$0xff]
  %s17 = scalar_lea.vmem %s1, 256
  %v18 = vld [vmem:[%s17] sm:$0xff]
  %v19 = vld [vmem:[%s17 + $0x8] sm:$0xff]
  %s20 = scalar_lea.vmem %s1, 512
  %v21 = vld [vmem:[%s20] sm:$0xff]
  %v22 = vld [vmem:[%s20 + $0x8] sm:$0xff]
  %v25 = vunpack.c.l.s4 1966171168
  %v26 = vunpack.c.0.s8 %v25
  %v27 = vlaneseq
  %v28 = vshrl.u32 %v27, 7
  %v29 = vsub.s32 %v26, %v28
  %v30 = vrot.slane %v11, %v29
  %v31 = vcombine.high %v30, %v30
  %v33 = vunpack.c.l.s4 1966171168
  %v34 = vunpack.c.0.s8 %v33
  %v35 = vlaneseq
  %v36 = vshrl.u32 %v35, 7
  %v37 = vsub.s32 %v34, %v36
  %v38 = vrot.slane %v30, %v37
  %v40 = vunpack.c.l.s4 1966171168
  %v41 = vunpack.c.0.s8 %v40
  %v42 = vlaneseq
  %v43 = vshrl.u32 %v42, 7
  %v44 = vsub.s32 %v41, %v43
  %v45 = vrot.slane %v31, %v44
  %v46 = vlaneseq
  %v47 = vshrl.u32 %v46, 7
  %v48 = vsub.s32 0, %v47
  %v49 = vrot.slane %v38, %v48
  %v50 = vlaneseq
  %v51 = vshrl.u32 %v50, 7
  %v52 = vsub.s32 0, %v51
  %v53 = vrot.slane %v45, %v52
  %v56 = vmul.f32 %v49, %v15
  %v57 = vmul.f32 %v49, %v16
  %v58 = vmul.f32 %v53, %v15
  %v59 = vmul.f32 %v53, %v16
  %v60 = vadd.f32 %v56, 0.0
  %v61 = vadd.f32 %v57, 0.0
  %v62 = vadd.f32 %v58, 0.0
  %v63 = vadd.f32 %v59, 0.0
  %v66 = vunpack.c.l.s4 1966171168
  %v67 = vunpack.c.0.s8 %v66
  %v68 = vlaneseq
  %v69 = vshrl.u32 %v68, 7
  %v70 = vsub.s32 %v67, %v69
  %v71 = vrot.slane %v13, %v70
  %v72 = vcombine.high %v71, %v71
  %v74 = vunpack.c.l.s4 1966171168
  %v75 = vunpack.c.0.s8 %v74
  %v76 = vlaneseq
  %v77 = vshrl.u32 %v76, 7
  %v78 = vsub.s32 %v75, %v77
  %v79 = vrot.slane %v71, %v78
  %v81 = vunpack.c.l.s4 1966171168
  %v82 = vunpack.c.0.s8 %v81
  %v83 = vlaneseq
  %v84 = vshrl.u32 %v83, 7
  %v85 = vsub.s32 %v82, %v84
  %v86 = vrot.slane %v72, %v85
  %v87 = vlaneseq
  %v88 = vshrl.u32 %v87, 7
  %v89 = vsub.s32 0, %v88
  %v90 = vrot.slane %v79, %v89
  %v91 = vlaneseq
  %v92 = vshrl.u32 %v91, 7
  %v93 = vsub.s32 0, %v92
  %v94 = vrot.slane %v86, %v93
  %v97 = vmul.f32 %v90, %v18
  %v98 = vmul.f32 %v90, %v19
  %v99 = vmul.f32 %v94, %v18
  %v100 = vmul.f32 %v94, %v19
  %v101 = vadd.f32 %v97, 0.0
  %v102 = vadd.f32 %v98, 0.0
  %v103 = vadd.f32 %v99, 0.0
  %v104 = vadd.f32 %v100, 0.0
  %v107 = vunpack.c.l.s4 1966171168
  %v108 = vunpack.c.0.s8 %v107
  %v109 = vlaneseq
  %v110 = vshrl.u32 %v109, 7
  %v111 = vsub.s32 %v108, %v110
  %v112 = vrot.slane %v14, %v111
  %v113 = vcombine.high %v112, %v112
  %v115 = vunpack.c.l.s4 1966171168
  %v116 = vunpack.c.0.s8 %v115
  %v117 = vlaneseq
  %v118 = vshrl.u32 %v117, 7
  %v119 = vsub.s32 %v116, %v118
  %v120 = vrot.slane %v112, %v119
  %v122 = vunpack.c.l.s4 1966171168
  %v123 = vunpack.c.0.s8 %v122
  %v124 = vlaneseq
  %v125 = vshrl.u32 %v124, 7
  %v126 = vsub.s32 %v123, %v125
  %v127 = vrot.slane %v113, %v126
  %v128 = vlaneseq
  %v129 = vshrl.u32 %v128, 7
  %v130 = vsub.s32 0, %v129
  %v131 = vrot.slane %v120, %v130
  %v132 = vlaneseq
  %v133 = vshrl.u32 %v132, 7
  %v134 = vsub.s32 0, %v133
  %v135 = vrot.slane %v127, %v134
  %v138 = vmul.f32 %v131, %v21
  %v139 = vmul.f32 %v131, %v22
  %v140 = vmul.f32 %v135, %v21
  %v141 = vmul.f32 %v135, %v22
  %v142 = vadd.f32 %v138, 0.0
  %v143 = vadd.f32 %v139, 0.0
  %v144 = vadd.f32 %v140, 0.0
  %v145 = vadd.f32 %v141, 0.0
  %s146 = scalar_lea.vmem %s0, 2
  %v147 = vld [vmem:[%s146] sm:$0x3]
  %s148 = scalar_lea.vmem %s0, 34
  %v149 = vld [vmem:[%s148] sm:$0x3]
  %v150 = vadd.f32 %v147, %v149
  %s151 = scalar_lea.vmem %s1, 16
  %v152 = vld [vmem:[%s151] sm:$0xff]
  %v153 = vld [vmem:[%s151 + $0x8] sm:$0xff]
  %s154 = scalar_lea.vmem %s1, 272
  %v155 = vld [vmem:[%s154] sm:$0xff]
  %v156 = vld [vmem:[%s154 + $0x8] sm:$0xff]
  %s157 = scalar_lea.vmem %s1, 528
  %v158 = vld [vmem:[%s157] sm:$0xff]
  %v159 = vld [vmem:[%s157 + $0x8] sm:$0xff]
  %v162 = vunpack.c.l.s4 1966171168
  %v163 = vunpack.c.0.s8 %v162
  %v164 = vlaneseq
  %v165 = vshrl.u32 %v164, 7
  %v166 = vsub.s32 %v163, %v165
  %v167 = vrot.slane %v147, %v166
  %v168 = vcombine.high %v167, %v167
  %v170 = vunpack.c.l.s4 1966171168
  %v171 = vunpack.c.0.s8 %v170
  %v172 = vlaneseq
  %v173 = vshrl.u32 %v172, 7
  %v174 = vsub.s32 %v171, %v173
  %v175 = vrot.slane %v167, %v174
  %v177 = vunpack.c.l.s4 1966171168
  %v178 = vunpack.c.0.s8 %v177
  %v179 = vlaneseq
  %v180 = vshrl.u32 %v179, 7
  %v181 = vsub.s32 %v178, %v180
  %v182 = vrot.slane %v168, %v181
  %v183 = vlaneseq
  %v184 = vshrl.u32 %v183, 7
  %v185 = vsub.s32 0, %v184
  %v186 = vrot.slane %v175, %v185
  %v187 = vlaneseq
  %v188 = vshrl.u32 %v187, 7
  %v189 = vsub.s32 0, %v188
  %v190 = vrot.slane %v182, %v189
  %v193 = vmul.f32 %v186, %v152
  %v194 = vmul.f32 %v186, %v153
  %v195 = vmul.f32 %v190, %v152
  %v196 = vmul.f32 %v190, %v153
  %v197 = vadd.f32 %v60, %v193
  %v198 = vadd.f32 %v61, %v194
  %v199 = vadd.f32 %v62, %v195
  %v200 = vadd.f32 %v63, %v196
  %v203 = vunpack.c.l.s4 1966171168
  %v204 = vunpack.c.0.s8 %v203
  %v205 = vlaneseq
  %v206 = vshrl.u32 %v205, 7
  %v207 = vsub.s32 %v204, %v206
  %v208 = vrot.slane %v149, %v207
  %v209 = vcombine.high %v208, %v208
  %v211 = vunpack.c.l.s4 1966171168
  %v212 = vunpack.c.0.s8 %v211
  %v213 = vlaneseq
  %v214 = vshrl.u32 %v213, 7
  %v215 = vsub.s32 %v212, %v214
  %v216 = vrot.slane %v208, %v215
  %v218 = vunpack.c.l.s4 1966171168
  %v219 = vunpack.c.0.s8 %v218
  %v220 = vlaneseq
  %v221 = vshrl.u32 %v220, 7
  %v222 = vsub.s32 %v219, %v221
  %v223 = vrot.slane %v209, %v222
  %v224 = vlaneseq
  %v225 = vshrl.u32 %v224, 7
  %v226 = vsub.s32 0, %v225
  %v227 = vrot.slane %v216, %v226
  %v228 = vlaneseq
  %v229 = vshrl.u32 %v228, 7
  %v230 = vsub.s32 0, %v229
  %v231 = vrot.slane %v223, %v230
  %v234 = vmul.f32 %v227, %v155
  %v235 = vmul.f32 %v227, %v156
  %v236 = vmul.f32 %v231, %v155
  %v237 = vmul.f32 %v231, %v156
  %v238 = vadd.f32 %v101, %v234
  %v239 = vadd.f32 %v102, %v235
  %v240 = vadd.f32 %v103, %v236
  %v241 = vadd.f32 %v104, %v237
  %v244 = vunpack.c.l.s4 1966171168
  %v245 = vunpack.c.0.s8 %v244
  %v246 = vlaneseq
  %v247 = vshrl.u32 %v246, 7
  %v248 = vsub.s32 %v245, %v247
  %v249 = vrot.slane %v150, %v248
  %v250 = vcombine.high %v249, %v249
  %v252 = vunpack.c.l.s4 1966171168
  %v253 = vunpack.c.0.s8 %v252
  %v254 = vlaneseq
  %v255 = vshrl.u32 %v254, 7
  %v256 = vsub.s32 %v253, %v255
  %v257 = vrot.slane %v249, %v256
  %v259 = vunpack.c.l.s4 1966171168
  %v260 = vunpack.c.0.s8 %v259
  %v261 = vlaneseq
  %v262 = vshrl.u32 %v261, 7
  %v263 = vsub.s32 %v260, %v262
  %v264 = vrot.slane %v250, %v263
  %v265 = vlaneseq
  %v266 = vshrl.u32 %v265, 7
  %v267 = vsub.s32 0, %v266
  %v268 = vrot.slane %v257, %v267
  %v269 = vlaneseq
  %v270 = vshrl.u32 %v269, 7
  %v271 = vsub.s32 0, %v270
  %v272 = vrot.slane %v264, %v271
  %v275 = vmul.f32 %v268, %v158
  %v276 = vmul.f32 %v268, %v159
  %v277 = vmul.f32 %v272, %v158
  %v278 = vmul.f32 %v272, %v159
  %v279 = vadd.f32 %v142, %v275
  %v280 = vadd.f32 %v143, %v276
  %v281 = vadd.f32 %v144, %v277
  %v282 = vadd.f32 %v145, %v278
  %s283 = scalar_lea.vmem %s0, 4
  %v284 = vld [vmem:[%s283] sm:$0x3]
  %s285 = scalar_lea.vmem %s0, 36
  %v286 = vld [vmem:[%s285] sm:$0x3]
  %v287 = vadd.f32 %v284, %v286
  %s288 = scalar_lea.vmem %s1, 32
  %v289 = vld [vmem:[%s288] sm:$0xff]
  %v290 = vld [vmem:[%s288 + $0x8] sm:$0xff]
  %s291 = scalar_lea.vmem %s1, 288
  %v292 = vld [vmem:[%s291] sm:$0xff]
  %v293 = vld [vmem:[%s291 + $0x8] sm:$0xff]
  %s294 = scalar_lea.vmem %s1, 544
  %v295 = vld [vmem:[%s294] sm:$0xff]
  %v296 = vld [vmem:[%s294 + $0x8] sm:$0xff]
  %v299 = vunpack.c.l.s4 1966171168
  %v300 = vunpack.c.0.s8 %v299
  %v301 = vlaneseq
  %v302 = vshrl.u32 %v301, 7
  %v303 = vsub.s32 %v300, %v302
  %v304 = vrot.slane %v284, %v303
  %v305 = vcombine.high %v304, %v304
  %v307 = vunpack.c.l.s4 1966171168
  %v308 = vunpack.c.0.s8 %v307
  %v309 = vlaneseq
  %v310 = vshrl.u32 %v309, 7
  %v311 = vsub.s32 %v308, %v310
  %v312 = vrot.slane %v304, %v311
  %v314 = vunpack.c.l.s4 1966171168
  %v315 = vunpack.c.0.s8 %v314
  %v316 = vlaneseq
  %v317 = vshrl.u32 %v316, 7
  %v318 = vsub.s32 %v315, %v317
  %v319 = vrot.slane %v305, %v318
  %v320 = vlaneseq
  %v321 = vshrl.u32 %v320, 7
  %v322 = vsub.s32 0, %v321
  %v323 = vrot.slane %v312, %v322
  %v324 = vlaneseq
  %v325 = vshrl.u32 %v324, 7
  %v326 = vsub.s32 0, %v325
  %v327 = vrot.slane %v319, %v326
  %v330 = vmul.f32 %v323, %v289
  %v331 = vmul.f32 %v323, %v290
  %v332 = vmul.f32 %v327, %v289
  %v333 = vmul.f32 %v327, %v290
  %v334 = vadd.f32 %v197, %v330
  %v335 = vadd.f32 %v198, %v331
  %v336 = vadd.f32 %v199, %v332
  %v337 = vadd.f32 %v200, %v333
  %v340 = vunpack.c.l.s4 1966171168
  %v341 = vunpack.c.0.s8 %v340
  %v342 = vlaneseq
  %v343 = vshrl.u32 %v342, 7
  %v344 = vsub.s32 %v341, %v343
  %v345 = vrot.slane %v286, %v344
  %v346 = vcombine.high %v345, %v345
  %v348 = vunpack.c.l.s4 1966171168
  %v349 = vunpack.c.0.s8 %v348
  %v350 = vlaneseq
  %v351 = vshrl.u32 %v350, 7
  %v352 = vsub.s32 %v349, %v351
  %v353 = vrot.slane %v345, %v352
  %v355 = vunpack.c.l.s4 1966171168
  %v356 = vunpack.c.0.s8 %v355
  %v357 = vlaneseq
  %v358 = vshrl.u32 %v357, 7
  %v359 = vsub.s32 %v356, %v358
  %v360 = vrot.slane %v346, %v359
  %v361 = vlaneseq
  %v362 = vshrl.u32 %v361, 7
  %v363 = vsub.s32 0, %v362
  %v364 = vrot.slane %v353, %v363
  %v365 = vlaneseq
  %v366 = vshrl.u32 %v365, 7
  %v367 = vsub.s32 0, %v366
  %v368 = vrot.slane %v360, %v367
  %v371 = vmul.f32 %v364, %v292
  %v372 = vmul.f32 %v364, %v293
  %v373 = vmul.f32 %v368, %v292
  %v374 = vmul.f32 %v368, %v293
  %v375 = vadd.f32 %v238, %v371
  %v376 = vadd.f32 %v239, %v372
  %v377 = vadd.f32 %v240, %v373
  %v378 = vadd.f32 %v241, %v374
  %v381 = vunpack.c.l.s4 1966171168
  %v382 = vunpack.c.0.s8 %v381
  %v383 = vlaneseq
  %v384 = vshrl.u32 %v383, 7
  %v385 = vsub.s32 %v382, %v384
  %v386 = vrot.slane %v287, %v385
  %v387 = vcombine.high %v386, %v386
  %v389 = vunpack.c.l.s4 1966171168
  %v390 = vunpack.c.0.s8 %v389
  %v391 = vlaneseq
  %v392 = vshrl.u32 %v391, 7
  %v393 = vsub.s32 %v390, %v392
  %v394 = vrot.slane %v386, %v393
  %v396 = vunpack.c.l.s4 1966171168
  %v397 = vunpack.c.0.s8 %v396
  %v398 = vlaneseq
  %v399 = vshrl.u32 %v398, 7
  %v400 = vsub.s32 %v397, %v399
  %v401 = vrot.slane %v387, %v400
  %v402 = vlaneseq
  %v403 = vshrl.u32 %v402, 7
  %v404 = vsub.s32 0, %v403
  %v405 = vrot.slane %v394, %v404
  %v406 = vlaneseq
  %v407 = vshrl.u32 %v406, 7
  %v408 = vsub.s32 0, %v407
  %v409 = vrot.slane %v401, %v408
  %v412 = vmul.f32 %v405, %v295
  %v413 = vmul.f32 %v405, %v296
  %v414 = vmul.f32 %v409, %v295
  %v415 = vmul.f32 %v409, %v296
  %v416 = vadd.f32 %v279, %v412
  %v417 = vadd.f32 %v280, %v413
  %v418 = vadd.f32 %v281, %v414
  %v419 = vadd.f32 %v282, %v415
  %s420 = scalar_lea.vmem %s0, 6
  %v421 = vld [vmem:[%s420] sm:$0x3]
  %s422 = scalar_lea.vmem %s0, 38
  %v423 = vld [vmem:[%s422] sm:$0x3]
  %v424 = vadd.f32 %v421, %v423
  %s425 = scalar_lea.vmem %s1, 48
  %v426 = vld [vmem:[%s425] sm:$0xff]
  %v427 = vld [vmem:[%s425 + $0x8] sm:$0xff]
  %s428 = scalar_lea.vmem %s1, 304
  %v429 = vld [vmem:[%s428] sm:$0xff]
  %v430 = vld [vmem:[%s428 + $0x8] sm:$0xff]
  %s431 = scalar_lea.vmem %s1, 560
  %v432 = vld [vmem:[%s431] sm:$0xff]
  %v433 = vld [vmem:[%s431 + $0x8] sm:$0xff]
  %v436 = vunpack.c.l.s4 1966171168
  %v437 = vunpack.c.0.s8 %v436
  %v438 = vlaneseq
  %v439 = vshrl.u32 %v438, 7
  %v440 = vsub.s32 %v437, %v439
  %v441 = vrot.slane %v421, %v440
  %v442 = vcombine.high %v441, %v441
  %v444 = vunpack.c.l.s4 1966171168
  %v445 = vunpack.c.0.s8 %v444
  %v446 = vlaneseq
  %v447 = vshrl.u32 %v446, 7
  %v448 = vsub.s32 %v445, %v447
  %v449 = vrot.slane %v441, %v448
  %v451 = vunpack.c.l.s4 1966171168
  %v452 = vunpack.c.0.s8 %v451
  %v453 = vlaneseq
  %v454 = vshrl.u32 %v453, 7
  %v455 = vsub.s32 %v452, %v454
  %v456 = vrot.slane %v442, %v455
  %v457 = vlaneseq
  %v458 = vshrl.u32 %v457, 7
  %v459 = vsub.s32 0, %v458
  %v460 = vrot.slane %v449, %v459
  %v461 = vlaneseq
  %v462 = vshrl.u32 %v461, 7
  %v463 = vsub.s32 0, %v462
  %v464 = vrot.slane %v456, %v463
  %v467 = vmul.f32 %v460, %v426
  %v468 = vmul.f32 %v460, %v427
  %v469 = vmul.f32 %v464, %v426
  %v470 = vmul.f32 %v464, %v427
  %v471 = vadd.f32 %v334, %v467
  %v472 = vadd.f32 %v335, %v468
  %v473 = vadd.f32 %v336, %v469
  %v474 = vadd.f32 %v337, %v470
  %v477 = vunpack.c.l.s4 1966171168
  %v478 = vunpack.c.0.s8 %v477
  %v479 = vlaneseq
  %v480 = vshrl.u32 %v479, 7
  %v481 = vsub.s32 %v478, %v480
  %v482 = vrot.slane %v423, %v481
  %v483 = vcombine.high %v482, %v482
  %v485 = vunpack.c.l.s4 1966171168
  %v486 = vunpack.c.0.s8 %v485
  %v487 = vlaneseq
  %v488 = vshrl.u32 %v487, 7
  %v489 = vsub.s32 %v486, %v488
  %v490 = vrot.slane %v482, %v489
  %v492 = vunpack.c.l.s4 1966171168
  %v493 = vunpack.c.0.s8 %v492
  %v494 = vlaneseq
  %v495 = vshrl.u32 %v494, 7
  %v496 = vsub.s32 %v493, %v495
  %v497 = vrot.slane %v483, %v496
  %v498 = vlaneseq
  %v499 = vshrl.u32 %v498, 7
  %v500 = vsub.s32 0, %v499
  %v501 = vrot.slane %v490, %v500
  %v502 = vlaneseq
  %v503 = vshrl.u32 %v502, 7
  %v504 = vsub.s32 0, %v503
  %v505 = vrot.slane %v497, %v504
  %v508 = vmul.f32 %v501, %v429
  %v509 = vmul.f32 %v501, %v430
  %v510 = vmul.f32 %v505, %v429
  %v511 = vmul.f32 %v505, %v430
  %v512 = vadd.f32 %v375, %v508
  %v513 = vadd.f32 %v376, %v509
  %v514 = vadd.f32 %v377, %v510
  %v515 = vadd.f32 %v378, %v511
  %v518 = vunpack.c.l.s4 1966171168
  %v519 = vunpack.c.0.s8 %v518
  %v520 = vlaneseq
  %v521 = vshrl.u32 %v520, 7
  %v522 = vsub.s32 %v519, %v521
  %v523 = vrot.slane %v424, %v522
  %v524 = vcombine.high %v523, %v523
  %v526 = vunpack.c.l.s4 1966171168
  %v527 = vunpack.c.0.s8 %v526
  %v528 = vlaneseq
  %v529 = vshrl.u32 %v528, 7
  %v530 = vsub.s32 %v527, %v529
  %v531 = vrot.slane %v523, %v530
  %v533 = vunpack.c.l.s4 1966171168
  %v534 = vunpack.c.0.s8 %v533
  %v535 = vlaneseq
  %v536 = vshrl.u32 %v535, 7
  %v537 = vsub.s32 %v534, %v536
  %v538 = vrot.slane %v524, %v537
  %v539 = vlaneseq
  %v540 = vshrl.u32 %v539, 7
  %v541 = vsub.s32 0, %v540
  %v542 = vrot.slane %v531, %v541
  %v543 = vlaneseq
  %v544 = vshrl.u32 %v543, 7
  %v545 = vsub.s32 0, %v544
  %v546 = vrot.slane %v538, %v545
  %v549 = vmul.f32 %v542, %v432
  %v550 = vmul.f32 %v542, %v433
  %v551 = vmul.f32 %v546, %v432
  %v552 = vmul.f32 %v546, %v433
  %v553 = vadd.f32 %v416, %v549
  %v554 = vadd.f32 %v417, %v550
  %v555 = vadd.f32 %v418, %v551
  %v556 = vadd.f32 %v419, %v552
  %s557 = scalar_lea.vmem %s0, 8
  %v558 = vld [vmem:[%s557] sm:$0x3]
  %s559 = scalar_lea.vmem %s0, 40
  %v560 = vld [vmem:[%s559] sm:$0x3]
  %v561 = vadd.f32 %v558, %v560
  %s562 = scalar_lea.vmem %s1, 64
  %v563 = vld [vmem:[%s562] sm:$0xff]
  %v564 = vld [vmem:[%s562 + $0x8] sm:$0xff]
  %s565 = scalar_lea.vmem %s1, 320
  %v566 = vld [vmem:[%s565] sm:$0xff]
  %v567 = vld [vmem:[%s565 + $0x8] sm:$0xff]
  %s568 = scalar_lea.vmem %s1, 576
  %v569 = vld [vmem:[%s568] sm:$0xff]
  %v570 = vld [vmem:[%s568 + $0x8] sm:$0xff]
  %v573 = vunpack.c.l.s4 1966171168
  %v574 = vunpack.c.0.s8 %v573
  %v575 = vlaneseq
  %v576 = vshrl.u32 %v575, 7
  %v577 = vsub.s32 %v574, %v576
  %v578 = vrot.slane %v558, %v577
  %v579 = vcombine.high %v578, %v578
  %v581 = vunpack.c.l.s4 1966171168
  %v582 = vunpack.c.0.s8 %v581
  %v583 = vlaneseq
  %v584 = vshrl.u32 %v583, 7
  %v585 = vsub.s32 %v582, %v584
  %v586 = vrot.slane %v578, %v585
  %v588 = vunpack.c.l.s4 1966171168
  %v589 = vunpack.c.0.s8 %v588
  %v590 = vlaneseq
  %v591 = vshrl.u32 %v590, 7
  %v592 = vsub.s32 %v589, %v591
  %v593 = vrot.slane %v579, %v592
  %v594 = vlaneseq
  %v595 = vshrl.u32 %v594, 7
  %v596 = vsub.s32 0, %v595
  %v597 = vrot.slane %v586, %v596
  %v598 = vlaneseq
  %v599 = vshrl.u32 %v598, 7
  %v600 = vsub.s32 0, %v599
  %v601 = vrot.slane %v593, %v600
  %v604 = vmul.f32 %v597, %v563
  %v605 = vmul.f32 %v597, %v564
  %v606 = vmul.f32 %v601, %v563
  %v607 = vmul.f32 %v601, %v564
  %v608 = vadd.f32 %v471, %v604
  %v609 = vadd.f32 %v472, %v605
  %v610 = vadd.f32 %v473, %v606
  %v611 = vadd.f32 %v474, %v607
  %v614 = vunpack.c.l.s4 1966171168
  %v615 = vunpack.c.0.s8 %v614
  %v616 = vlaneseq
  %v617 = vshrl.u32 %v616, 7
  %v618 = vsub.s32 %v615, %v617
  %v619 = vrot.slane %v560, %v618
  %v620 = vcombine.high %v619, %v619
  %v622 = vunpack.c.l.s4 1966171168
  %v623 = vunpack.c.0.s8 %v622
  %v624 = vlaneseq
  %v625 = vshrl.u32 %v624, 7
  %v626 = vsub.s32 %v623, %v625
  %v627 = vrot.slane %v619, %v626
  %v629 = vunpack.c.l.s4 1966171168
  %v630 = vunpack.c.0.s8 %v629
  %v631 = vlaneseq
  %v632 = vshrl.u32 %v631, 7
  %v633 = vsub.s32 %v630, %v632
  %v634 = vrot.slane %v620, %v633
  %v635 = vlaneseq
  %v636 = vshrl.u32 %v635, 7
  %v637 = vsub.s32 0, %v636
  %v638 = vrot.slane %v627, %v637
  %v639 = vlaneseq
  %v640 = vshrl.u32 %v639, 7
  %v641 = vsub.s32 0, %v640
  %v642 = vrot.slane %v634, %v641
  %v645 = vmul.f32 %v638, %v566
  %v646 = vmul.f32 %v638, %v567
  %v647 = vmul.f32 %v642, %v566
  %v648 = vmul.f32 %v642, %v567
  %v649 = vadd.f32 %v512, %v645
  %v650 = vadd.f32 %v513, %v646
  %v651 = vadd.f32 %v514, %v647
  %v652 = vadd.f32 %v515, %v648
  %v655 = vunpack.c.l.s4 1966171168
  %v656 = vunpack.c.0.s8 %v655
  %v657 = vlaneseq
  %v658 = vshrl.u32 %v657, 7
  %v659 = vsub.s32 %v656, %v658
  %v660 = vrot.slane %v561, %v659
  %v661 = vcombine.high %v660, %v660
  %v663 = vunpack.c.l.s4 1966171168
  %v664 = vunpack.c.0.s8 %v663
  %v665 = vlaneseq
  %v666 = vshrl.u32 %v665, 7
  %v667 = vsub.s32 %v664, %v666
  %v668 = vrot.slane %v660, %v667
  %v670 = vunpack.c.l.s4 1966171168
  %v671 = vunpack.c.0.s8 %v670
  %v672 = vlaneseq
  %v673 = vshrl.u32 %v672, 7
  %v674 = vsub.s32 %v671, %v673
  %v675 = vrot.slane %v661, %v674
  %v676 = vlaneseq
  %v677 = vshrl.u32 %v676, 7
  %v678 = vsub.s32 0, %v677
  %v679 = vrot.slane %v668, %v678
  %v680 = vlaneseq
  %v681 = vshrl.u32 %v680, 7
  %v682 = vsub.s32 0, %v681
  %v683 = vrot.slane %v675, %v682
  %v686 = vmul.f32 %v679, %v569
  %v687 = vmul.f32 %v679, %v570
  %v688 = vmul.f32 %v683, %v569
  %v689 = vmul.f32 %v683, %v570
  %v690 = vadd.f32 %v553, %v686
  %v691 = vadd.f32 %v554, %v687
  %v692 = vadd.f32 %v555, %v688
  %v693 = vadd.f32 %v556, %v689
  %s694 = scalar_lea.vmem %s0, 10
  %v695 = vld [vmem:[%s694] sm:$0x3]
  %s696 = scalar_lea.vmem %s0, 42
  %v697 = vld [vmem:[%s696] sm:$0x3]
  %v698 = vadd.f32 %v695, %v697
  %s699 = scalar_lea.vmem %s1, 80
  %v700 = vld [vmem:[%s699] sm:$0xff]
  %v701 = vld [vmem:[%s699 + $0x8] sm:$0xff]
  %s702 = scalar_lea.vmem %s1, 336
  %v703 = vld [vmem:[%s702] sm:$0xff]
  %v704 = vld [vmem:[%s702 + $0x8] sm:$0xff]
  %s705 = scalar_lea.vmem %s1, 592
  %v706 = vld [vmem:[%s705] sm:$0xff]
  %v707 = vld [vmem:[%s705 + $0x8] sm:$0xff]
  %v710 = vunpack.c.l.s4 1966171168
  %v711 = vunpack.c.0.s8 %v710
  %v712 = vlaneseq
  %v713 = vshrl.u32 %v712, 7
  %v714 = vsub.s32 %v711, %v713
  %v715 = vrot.slane %v695, %v714
  %v716 = vcombine.high %v715, %v715
  %v718 = vunpack.c.l.s4 1966171168
  %v719 = vunpack.c.0.s8 %v718
  %v720 = vlaneseq
  %v721 = vshrl.u32 %v720, 7
  %v722 = vsub.s32 %v719, %v721
  %v723 = vrot.slane %v715, %v722
  %v725 = vunpack.c.l.s4 1966171168
  %v726 = vunpack.c.0.s8 %v725
  %v727 = vlaneseq
  %v728 = vshrl.u32 %v727, 7
  %v729 = vsub.s32 %v726, %v728
  %v730 = vrot.slane %v716, %v729
  %v731 = vlaneseq
  %v732 = vshrl.u32 %v731, 7
  %v733 = vsub.s32 0, %v732
  %v734 = vrot.slane %v723, %v733
  %v735 = vlaneseq
  %v736 = vshrl.u32 %v735, 7
  %v737 = vsub.s32 0, %v736
  %v738 = vrot.slane %v730, %v737
  %v741 = vmul.f32 %v734, %v700
  %v742 = vmul.f32 %v734, %v701
  %v743 = vmul.f32 %v738, %v700
  %v744 = vmul.f32 %v738, %v701
  %v745 = vadd.f32 %v608, %v741
  %v746 = vadd.f32 %v609, %v742
  %v747 = vadd.f32 %v610, %v743
  %v748 = vadd.f32 %v611, %v744
  %v751 = vunpack.c.l.s4 1966171168
  %v752 = vunpack.c.0.s8 %v751
  %v753 = vlaneseq
  %v754 = vshrl.u32 %v753, 7
  %v755 = vsub.s32 %v752, %v754
  %v756 = vrot.slane %v697, %v755
  %v757 = vcombine.high %v756, %v756
  %v759 = vunpack.c.l.s4 1966171168
  %v760 = vunpack.c.0.s8 %v759
  %v761 = vlaneseq
  %v762 = vshrl.u32 %v761, 7
  %v763 = vsub.s32 %v760, %v762
  %v764 = vrot.slane %v756, %v763
  %v766 = vunpack.c.l.s4 1966171168
  %v767 = vunpack.c.0.s8 %v766
  %v768 = vlaneseq
  %v769 = vshrl.u32 %v768, 7
  %v770 = vsub.s32 %v767, %v769
  %v771 = vrot.slane %v757, %v770
  %v772 = vlaneseq
  %v773 = vshrl.u32 %v772, 7
  %v774 = vsub.s32 0, %v773
  %v775 = vrot.slane %v764, %v774
  %v776 = vlaneseq
  %v777 = vshrl.u32 %v776, 7
  %v778 = vsub.s32 0, %v777
  %v779 = vrot.slane %v771, %v778
  %v782 = vmul.f32 %v775, %v703
  %v783 = vmul.f32 %v775, %v704
  %v784 = vmul.f32 %v779, %v703
  %v785 = vmul.f32 %v779, %v704
  %v786 = vadd.f32 %v649, %v782
  %v787 = vadd.f32 %v650, %v783
  %v788 = vadd.f32 %v651, %v784
  %v789 = vadd.f32 %v652, %v785
  %v792 = vunpack.c.l.s4 1966171168
  %v793 = vunpack.c.0.s8 %v792
  %v794 = vlaneseq
  %v795 = vshrl.u32 %v794, 7
  %v796 = vsub.s32 %v793, %v795
  %v797 = vrot.slane %v698, %v796
  %v798 = vcombine.high %v797, %v797
  %v800 = vunpack.c.l.s4 1966171168
  %v801 = vunpack.c.0.s8 %v800
  %v802 = vlaneseq
  %v803 = vshrl.u32 %v802, 7
  %v804 = vsub.s32 %v801, %v803
  %v805 = vrot.slane %v797, %v804
  %v807 = vunpack.c.l.s4 1966171168
  %v808 = vunpack.c.0.s8 %v807
  %v809 = vlaneseq
  %v810 = vshrl.u32 %v809, 7
  %v811 = vsub.s32 %v808, %v810
  %v812 = vrot.slane %v798, %v811
  %v813 = vlaneseq
  %v814 = vshrl.u32 %v813, 7
  %v815 = vsub.s32 0, %v814
  %v816 = vrot.slane %v805, %v815
  %v817 = vlaneseq
  %v818 = vshrl.u32 %v817, 7
  %v819 = vsub.s32 0, %v818
  %v820 = vrot.slane %v812, %v819
  %v823 = vmul.f32 %v816, %v706
  %v824 = vmul.f32 %v816, %v707
  %v825 = vmul.f32 %v820, %v706
  %v826 = vmul.f32 %v820, %v707
  %v827 = vadd.f32 %v690, %v823
  %v828 = vadd.f32 %v691, %v824
  %v829 = vadd.f32 %v692, %v825
  %v830 = vadd.f32 %v693, %v826
  %s831 = scalar_lea.vmem %s0, 12
  %v832 = vld [vmem:[%s831] sm:$0x3]
  %s833 = scalar_lea.vmem %s0, 44
  %v834 = vld [vmem:[%s833] sm:$0x3]
  %v835 = vadd.f32 %v832, %v834
  %s836 = scalar_lea.vmem %s1, 96
  %v837 = vld [vmem:[%s836] sm:$0xff]
  %v838 = vld [vmem:[%s836 + $0x8] sm:$0xff]
  %s839 = scalar_lea.vmem %s1, 352
  %v840 = vld [vmem:[%s839] sm:$0xff]
  %v841 = vld [vmem:[%s839 + $0x8] sm:$0xff]
  %s842 = scalar_lea.vmem %s1, 608
  %v843 = vld [vmem:[%s842] sm:$0xff]
  %v844 = vld [vmem:[%s842 + $0x8] sm:$0xff]
  %v847 = vunpack.c.l.s4 1966171168
  %v848 = vunpack.c.0.s8 %v847
  %v849 = vlaneseq
  %v850 = vshrl.u32 %v849, 7
  %v851 = vsub.s32 %v848, %v850
  %v852 = vrot.slane %v832, %v851
  %v853 = vcombine.high %v852, %v852
  %v855 = vunpack.c.l.s4 1966171168
  %v856 = vunpack.c.0.s8 %v855
  %v857 = vlaneseq
  %v858 = vshrl.u32 %v857, 7
  %v859 = vsub.s32 %v856, %v858
  %v860 = vrot.slane %v852, %v859
  %v862 = vunpack.c.l.s4 1966171168
  %v863 = vunpack.c.0.s8 %v862
  %v864 = vlaneseq
  %v865 = vshrl.u32 %v864, 7
  %v866 = vsub.s32 %v863, %v865
  %v867 = vrot.slane %v853, %v866
  %v868 = vlaneseq
  %v869 = vshrl.u32 %v868, 7
  %v870 = vsub.s32 0, %v869
  %v871 = vrot.slane %v860, %v870
  %v872 = vlaneseq
  %v873 = vshrl.u32 %v872, 7
  %v874 = vsub.s32 0, %v873
  %v875 = vrot.slane %v867, %v874
  %v878 = vmul.f32 %v871, %v837
  %v879 = vmul.f32 %v871, %v838
  %v880 = vmul.f32 %v875, %v837
  %v881 = vmul.f32 %v875, %v838
  %v882 = vadd.f32 %v745, %v878
  %v883 = vadd.f32 %v746, %v879
  %v884 = vadd.f32 %v747, %v880
  %v885 = vadd.f32 %v748, %v881
  %v888 = vunpack.c.l.s4 1966171168
  %v889 = vunpack.c.0.s8 %v888
  %v890 = vlaneseq
  %v891 = vshrl.u32 %v890, 7
  %v892 = vsub.s32 %v889, %v891
  %v893 = vrot.slane %v834, %v892
  %v894 = vcombine.high %v893, %v893
  %v896 = vunpack.c.l.s4 1966171168
  %v897 = vunpack.c.0.s8 %v896
  %v898 = vlaneseq
  %v899 = vshrl.u32 %v898, 7
  %v900 = vsub.s32 %v897, %v899
  %v901 = vrot.slane %v893, %v900
  %v903 = vunpack.c.l.s4 1966171168
  %v904 = vunpack.c.0.s8 %v903
  %v905 = vlaneseq
  %v906 = vshrl.u32 %v905, 7
  %v907 = vsub.s32 %v904, %v906
  %v908 = vrot.slane %v894, %v907
  %v909 = vlaneseq
  %v910 = vshrl.u32 %v909, 7
  %v911 = vsub.s32 0, %v910
  %v912 = vrot.slane %v901, %v911
  %v913 = vlaneseq
  %v914 = vshrl.u32 %v913, 7
  %v915 = vsub.s32 0, %v914
  %v916 = vrot.slane %v908, %v915
  %v919 = vmul.f32 %v912, %v840
  %v920 = vmul.f32 %v912, %v841
  %v921 = vmul.f32 %v916, %v840
  %v922 = vmul.f32 %v916, %v841
  %v923 = vadd.f32 %v786, %v919
  %v924 = vadd.f32 %v787, %v920
  %v925 = vadd.f32 %v788, %v921
  %v926 = vadd.f32 %v789, %v922
  %v929 = vunpack.c.l.s4 1966171168
  %v930 = vunpack.c.0.s8 %v929
  %v931 = vlaneseq
  %v932 = vshrl.u32 %v931, 7
  %v933 = vsub.s32 %v930, %v932
  %v934 = vrot.slane %v835, %v933
  %v935 = vcombine.high %v934, %v934
  %v937 = vunpack.c.l.s4 1966171168
  %v938 = vunpack.c.0.s8 %v937
  %v939 = vlaneseq
  %v940 = vshrl.u32 %v939, 7
  %v941 = vsub.s32 %v938, %v940
  %v942 = vrot.slane %v934, %v941
  %v944 = vunpack.c.l.s4 1966171168
  %v945 = vunpack.c.0.s8 %v944
  %v946 = vlaneseq
  %v947 = vshrl.u32 %v946, 7
  %v948 = vsub.s32 %v945, %v947
  %v949 = vrot.slane %v935, %v948
  %v950 = vlaneseq
  %v951 = vshrl.u32 %v950, 7
  %v952 = vsub.s32 0, %v951
  %v953 = vrot.slane %v942, %v952
  %v954 = vlaneseq
  %v955 = vshrl.u32 %v954, 7
  %v956 = vsub.s32 0, %v955
  %v957 = vrot.slane %v949, %v956
  %v960 = vmul.f32 %v953, %v843
  %v961 = vmul.f32 %v953, %v844
  %v962 = vmul.f32 %v957, %v843
  %v963 = vmul.f32 %v957, %v844
  %v964 = vadd.f32 %v827, %v960
  %v965 = vadd.f32 %v828, %v961
  %v966 = vadd.f32 %v829, %v962
  %v967 = vadd.f32 %v830, %v963
  %s968 = scalar_lea.vmem %s0, 14
  %v969 = vld [vmem:[%s968] sm:$0x3]
  %s970 = scalar_lea.vmem %s0, 46
  %v971 = vld [vmem:[%s970] sm:$0x3]
  %v972 = vadd.f32 %v969, %v971
  %s973 = scalar_lea.vmem %s1, 112
  %v974 = vld [vmem:[%s973] sm:$0xff]
  %v975 = vld [vmem:[%s973 + $0x8] sm:$0xff]
  %s976 = scalar_lea.vmem %s1, 368
  %v977 = vld [vmem:[%s976] sm:$0xff]
  %v978 = vld [vmem:[%s976 + $0x8] sm:$0xff]
  %s979 = scalar_lea.vmem %s1, 624
  %v980 = vld [vmem:[%s979] sm:$0xff]
  %v981 = vld [vmem:[%s979 + $0x8] sm:$0xff]
  %v984 = vunpack.c.l.s4 1966171168
  %v985 = vunpack.c.0.s8 %v984
  %v986 = vlaneseq
  %v987 = vshrl.u32 %v986, 7
  %v988 = vsub.s32 %v985, %v987
  %v989 = vrot.slane %v969, %v988
  %v990 = vcombine.high %v989, %v989
  %v992 = vunpack.c.l.s4 1966171168
  %v993 = vunpack.c.0.s8 %v992
  %v994 = vlaneseq
  %v995 = vshrl.u32 %v994, 7
  %v996 = vsub.s32 %v993, %v995
  %v997 = vrot.slane %v989, %v996
  %v999 = vunpack.c.l.s4 1966171168
  %v1000 = vunpack.c.0.s8 %v999
  %v1001 = vlaneseq
  %v1002 = vshrl.u32 %v1001, 7
  %v1003 = vsub.s32 %v1000, %v1002
  %v1004 = vrot.slane %v990, %v1003
  %v1005 = vlaneseq
  %v1006 = vshrl.u32 %v1005, 7
  %v1007 = vsub.s32 0, %v1006
  %v1008 = vrot.slane %v997, %v1007
  %v1009 = vlaneseq
  %v1010 = vshrl.u32 %v1009, 7
  %v1011 = vsub.s32 0, %v1010
  %v1012 = vrot.slane %v1004, %v1011
  %v1015 = vmul.f32 %v1008, %v974
  %v1016 = vmul.f32 %v1008, %v975
  %v1017 = vmul.f32 %v1012, %v974
  %v1018 = vmul.f32 %v1012, %v975
  %v1019 = vadd.f32 %v882, %v1015
  %v1020 = vadd.f32 %v883, %v1016
  %v1021 = vadd.f32 %v884, %v1017
  %v1022 = vadd.f32 %v885, %v1018
  %v1025 = vunpack.c.l.s4 1966171168
  %v1026 = vunpack.c.0.s8 %v1025
  %v1027 = vlaneseq
  %v1028 = vshrl.u32 %v1027, 7
  %v1029 = vsub.s32 %v1026, %v1028
  %v1030 = vrot.slane %v971, %v1029
  %v1031 = vcombine.high %v1030, %v1030
  %v1033 = vunpack.c.l.s4 1966171168
  %v1034 = vunpack.c.0.s8 %v1033
  %v1035 = vlaneseq
  %v1036 = vshrl.u32 %v1035, 7
  %v1037 = vsub.s32 %v1034, %v1036
  %v1038 = vrot.slane %v1030, %v1037
  %v1040 = vunpack.c.l.s4 1966171168
  %v1041 = vunpack.c.0.s8 %v1040
  %v1042 = vlaneseq
  %v1043 = vshrl.u32 %v1042, 7
  %v1044 = vsub.s32 %v1041, %v1043
  %v1045 = vrot.slane %v1031, %v1044
  %v1046 = vlaneseq
  %v1047 = vshrl.u32 %v1046, 7
  %v1048 = vsub.s32 0, %v1047
  %v1049 = vrot.slane %v1038, %v1048
  %v1050 = vlaneseq
  %v1051 = vshrl.u32 %v1050, 7
  %v1052 = vsub.s32 0, %v1051
  %v1053 = vrot.slane %v1045, %v1052
  %v1056 = vmul.f32 %v1049, %v977
  %v1057 = vmul.f32 %v1049, %v978
  %v1058 = vmul.f32 %v1053, %v977
  %v1059 = vmul.f32 %v1053, %v978
  %v1060 = vadd.f32 %v923, %v1056
  %v1061 = vadd.f32 %v924, %v1057
  %v1062 = vadd.f32 %v925, %v1058
  %v1063 = vadd.f32 %v926, %v1059
  %v1066 = vunpack.c.l.s4 1966171168
  %v1067 = vunpack.c.0.s8 %v1066
  %v1068 = vlaneseq
  %v1069 = vshrl.u32 %v1068, 7
  %v1070 = vsub.s32 %v1067, %v1069
  %v1071 = vrot.slane %v972, %v1070
  %v1072 = vcombine.high %v1071, %v1071
  %v1074 = vunpack.c.l.s4 1966171168
  %v1075 = vunpack.c.0.s8 %v1074
  %v1076 = vlaneseq
  %v1077 = vshrl.u32 %v1076, 7
  %v1078 = vsub.s32 %v1075, %v1077
  %v1079 = vrot.slane %v1071, %v1078
  %v1081 = vunpack.c.l.s4 1966171168
  %v1082 = vunpack.c.0.s8 %v1081
  %v1083 = vlaneseq
  %v1084 = vshrl.u32 %v1083, 7
  %v1085 = vsub.s32 %v1082, %v1084
  %v1086 = vrot.slane %v1072, %v1085
  %v1087 = vlaneseq
  %v1088 = vshrl.u32 %v1087, 7
  %v1089 = vsub.s32 0, %v1088
  %v1090 = vrot.slane %v1079, %v1089
  %v1091 = vlaneseq
  %v1092 = vshrl.u32 %v1091, 7
  %v1093 = vsub.s32 0, %v1092
  %v1094 = vrot.slane %v1086, %v1093
  %v1097 = vmul.f32 %v1090, %v980
  %v1098 = vmul.f32 %v1090, %v981
  %v1099 = vmul.f32 %v1094, %v980
  %v1100 = vmul.f32 %v1094, %v981
  %v1101 = vadd.f32 %v964, %v1097
  %v1102 = vadd.f32 %v965, %v1098
  %v1103 = vadd.f32 %v966, %v1099
  %v1104 = vadd.f32 %v967, %v1100
  %s1105 = scalar_lea.vmem %s0, 16
  %v1106 = vld [vmem:[%s1105] sm:$0x3]
  %s1107 = scalar_lea.vmem %s0, 48
  %v1108 = vld [vmem:[%s1107] sm:$0x3]
  %v1109 = vadd.f32 %v1106, %v1108
  %s1110 = scalar_lea.vmem %s1, 128
  %v1111 = vld [vmem:[%s1110] sm:$0xff]
  %v1112 = vld [vmem:[%s1110 + $0x8] sm:$0xff]
  %s1113 = scalar_lea.vmem %s1, 384
  %v1114 = vld [vmem:[%s1113] sm:$0xff]
  %v1115 = vld [vmem:[%s1113 + $0x8] sm:$0xff]
  %s1116 = scalar_lea.vmem %s1, 640
  %v1117 = vld [vmem:[%s1116] sm:$0xff]
  %v1118 = vld [vmem:[%s1116 + $0x8] sm:$0xff]
  %v1121 = vunpack.c.l.s4 1966171168
  %v1122 = vunpack.c.0.s8 %v1121
  %v1123 = vlaneseq
  %v1124 = vshrl.u32 %v1123, 7
  %v1125 = vsub.s32 %v1122, %v1124
  %v1126 = vrot.slane %v1106, %v1125
  %v1127 = vcombine.high %v1126, %v1126
  %v1129 = vunpack.c.l.s4 1966171168
  %v1130 = vunpack.c.0.s8 %v1129
  %v1131 = vlaneseq
  %v1132 = vshrl.u32 %v1131, 7
  %v1133 = vsub.s32 %v1130, %v1132
  %v1134 = vrot.slane %v1126, %v1133
  %v1136 = vunpack.c.l.s4 1966171168
  %v1137 = vunpack.c.0.s8 %v1136
  %v1138 = vlaneseq
  %v1139 = vshrl.u32 %v1138, 7
  %v1140 = vsub.s32 %v1137, %v1139
  %v1141 = vrot.slane %v1127, %v1140
  %v1142 = vlaneseq
  %v1143 = vshrl.u32 %v1142, 7
  %v1144 = vsub.s32 0, %v1143
  %v1145 = vrot.slane %v1134, %v1144
  %v1146 = vlaneseq
  %v1147 = vshrl.u32 %v1146, 7
  %v1148 = vsub.s32 0, %v1147
  %v1149 = vrot.slane %v1141, %v1148
  %v1152 = vmul.f32 %v1145, %v1111
  %v1153 = vmul.f32 %v1145, %v1112
  %v1154 = vmul.f32 %v1149, %v1111
  %v1155 = vmul.f32 %v1149, %v1112
  %v1156 = vadd.f32 %v1019, %v1152
  %v1157 = vadd.f32 %v1020, %v1153
  %v1158 = vadd.f32 %v1021, %v1154
  %v1159 = vadd.f32 %v1022, %v1155
  %v1162 = vunpack.c.l.s4 1966171168
  %v1163 = vunpack.c.0.s8 %v1162
  %v1164 = vlaneseq
  %v1165 = vshrl.u32 %v1164, 7
  %v1166 = vsub.s32 %v1163, %v1165
  %v1167 = vrot.slane %v1108, %v1166
  %v1168 = vcombine.high %v1167, %v1167
  %v1170 = vunpack.c.l.s4 1966171168
  %v1171 = vunpack.c.0.s8 %v1170
  %v1172 = vlaneseq
  %v1173 = vshrl.u32 %v1172, 7
  %v1174 = vsub.s32 %v1171, %v1173
  %v1175 = vrot.slane %v1167, %v1174
  %v1177 = vunpack.c.l.s4 1966171168
  %v1178 = vunpack.c.0.s8 %v1177
  %v1179 = vlaneseq
  %v1180 = vshrl.u32 %v1179, 7
  %v1181 = vsub.s32 %v1178, %v1180
  %v1182 = vrot.slane %v1168, %v1181
  %v1183 = vlaneseq
  %v1184 = vshrl.u32 %v1183, 7
  %v1185 = vsub.s32 0, %v1184
  %v1186 = vrot.slane %v1175, %v1185
  %v1187 = vlaneseq
  %v1188 = vshrl.u32 %v1187, 7
  %v1189 = vsub.s32 0, %v1188
  %v1190 = vrot.slane %v1182, %v1189
  %v1193 = vmul.f32 %v1186, %v1114
  %v1194 = vmul.f32 %v1186, %v1115
  %v1195 = vmul.f32 %v1190, %v1114
  %v1196 = vmul.f32 %v1190, %v1115
  %v1197 = vadd.f32 %v1060, %v1193
  %v1198 = vadd.f32 %v1061, %v1194
  %v1199 = vadd.f32 %v1062, %v1195
  %v1200 = vadd.f32 %v1063, %v1196
  %v1203 = vunpack.c.l.s4 1966171168
  %v1204 = vunpack.c.0.s8 %v1203
  %v1205 = vlaneseq
  %v1206 = vshrl.u32 %v1205, 7
  %v1207 = vsub.s32 %v1204, %v1206
  %v1208 = vrot.slane %v1109, %v1207
  %v1209 = vcombine.high %v1208, %v1208
  %v1211 = vunpack.c.l.s4 1966171168
  %v1212 = vunpack.c.0.s8 %v1211
  %v1213 = vlaneseq
  %v1214 = vshrl.u32 %v1213, 7
  %v1215 = vsub.s32 %v1212, %v1214
  %v1216 = vrot.slane %v1208, %v1215
  %v1218 = vunpack.c.l.s4 1966171168
  %v1219 = vunpack.c.0.s8 %v1218
  %v1220 = vlaneseq
  %v1221 = vshrl.u32 %v1220, 7
  %v1222 = vsub.s32 %v1219, %v1221
  %v1223 = vrot.slane %v1209, %v1222
  %v1224 = vlaneseq
  %v1225 = vshrl.u32 %v1224, 7
  %v1226 = vsub.s32 0, %v1225
  %v1227 = vrot.slane %v1216, %v1226
  %v1228 = vlaneseq
  %v1229 = vshrl.u32 %v1228, 7
  %v1230 = vsub.s32 0, %v1229
  %v1231 = vrot.slane %v1223, %v1230
  %v1234 = vmul.f32 %v1227, %v1117
  %v1235 = vmul.f32 %v1227, %v1118
  %v1236 = vmul.f32 %v1231, %v1117
  %v1237 = vmul.f32 %v1231, %v1118
  %v1238 = vadd.f32 %v1101, %v1234
  %v1239 = vadd.f32 %v1102, %v1235
  %v1240 = vadd.f32 %v1103, %v1236
  %v1241 = vadd.f32 %v1104, %v1237
  %s1242 = scalar_lea.vmem %s0, 18
  %v1243 = vld [vmem:[%s1242] sm:$0x3]
  %s1244 = scalar_lea.vmem %s0, 50
  %v1245 = vld [vmem:[%s1244] sm:$0x3]
  %v1246 = vadd.f32 %v1243, %v1245
  %s1247 = scalar_lea.vmem %s1, 144
  %v1248 = vld [vmem:[%s1247] sm:$0xff]
  %v1249 = vld [vmem:[%s1247 + $0x8] sm:$0xff]
  %s1250 = scalar_lea.vmem %s1, 400
  %v1251 = vld [vmem:[%s1250] sm:$0xff]
  %v1252 = vld [vmem:[%s1250 + $0x8] sm:$0xff]
  %s1253 = scalar_lea.vmem %s1, 656
  %v1254 = vld [vmem:[%s1253] sm:$0xff]
  %v1255 = vld [vmem:[%s1253 + $0x8] sm:$0xff]
  %v1258 = vunpack.c.l.s4 1966171168
  %v1259 = vunpack.c.0.s8 %v1258
  %v1260 = vlaneseq
  %v1261 = vshrl.u32 %v1260, 7
  %v1262 = vsub.s32 %v1259, %v1261
  %v1263 = vrot.slane %v1243, %v1262
  %v1264 = vcombine.high %v1263, %v1263
  %v1266 = vunpack.c.l.s4 1966171168
  %v1267 = vunpack.c.0.s8 %v1266
  %v1268 = vlaneseq
  %v1269 = vshrl.u32 %v1268, 7
  %v1270 = vsub.s32 %v1267, %v1269
  %v1271 = vrot.slane %v1263, %v1270
  %v1273 = vunpack.c.l.s4 1966171168
  %v1274 = vunpack.c.0.s8 %v1273
  %v1275 = vlaneseq
  %v1276 = vshrl.u32 %v1275, 7
  %v1277 = vsub.s32 %v1274, %v1276
  %v1278 = vrot.slane %v1264, %v1277
  %v1279 = vlaneseq
  %v1280 = vshrl.u32 %v1279, 7
  %v1281 = vsub.s32 0, %v1280
  %v1282 = vrot.slane %v1271, %v1281
  %v1283 = vlaneseq
  %v1284 = vshrl.u32 %v1283, 7
  %v1285 = vsub.s32 0, %v1284
  %v1286 = vrot.slane %v1278, %v1285
  %v1289 = vmul.f32 %v1282, %v1248
  %v1290 = vmul.f32 %v1282, %v1249
  %v1291 = vmul.f32 %v1286, %v1248
  %v1292 = vmul.f32 %v1286, %v1249
  %v1293 = vadd.f32 %v1156, %v1289
  %v1294 = vadd.f32 %v1157, %v1290
  %v1295 = vadd.f32 %v1158, %v1291
  %v1296 = vadd.f32 %v1159, %v1292
  %v1299 = vunpack.c.l.s4 1966171168
  %v1300 = vunpack.c.0.s8 %v1299
  %v1301 = vlaneseq
  %v1302 = vshrl.u32 %v1301, 7
  %v1303 = vsub.s32 %v1300, %v1302
  %v1304 = vrot.slane %v1245, %v1303
  %v1305 = vcombine.high %v1304, %v1304
  %v1307 = vunpack.c.l.s4 1966171168
  %v1308 = vunpack.c.0.s8 %v1307
  %v1309 = vlaneseq
  %v1310 = vshrl.u32 %v1309, 7
  %v1311 = vsub.s32 %v1308, %v1310
  %v1312 = vrot.slane %v1304, %v1311
  %v1314 = vunpack.c.l.s4 1966171168
  %v1315 = vunpack.c.0.s8 %v1314
  %v1316 = vlaneseq
  %v1317 = vshrl.u32 %v1316, 7
  %v1318 = vsub.s32 %v1315, %v1317
  %v1319 = vrot.slane %v1305, %v1318
  %v1320 = vlaneseq
  %v1321 = vshrl.u32 %v1320, 7
  %v1322 = vsub.s32 0, %v1321
  %v1323 = vrot.slane %v1312, %v1322
  %v1324 = vlaneseq
  %v1325 = vshrl.u32 %v1324, 7
  %v1326 = vsub.s32 0, %v1325
  %v1327 = vrot.slane %v1319, %v1326
  %v1330 = vmul.f32 %v1323, %v1251
  %v1331 = vmul.f32 %v1323, %v1252
  %v1332 = vmul.f32 %v1327, %v1251
  %v1333 = vmul.f32 %v1327, %v1252
  %v1334 = vadd.f32 %v1197, %v1330
  %v1335 = vadd.f32 %v1198, %v1331
  %v1336 = vadd.f32 %v1199, %v1332
  %v1337 = vadd.f32 %v1200, %v1333
  %v1340 = vunpack.c.l.s4 1966171168
  %v1341 = vunpack.c.0.s8 %v1340
  %v1342 = vlaneseq
  %v1343 = vshrl.u32 %v1342, 7
  %v1344 = vsub.s32 %v1341, %v1343
  %v1345 = vrot.slane %v1246, %v1344
  %v1346 = vcombine.high %v1345, %v1345
  %v1348 = vunpack.c.l.s4 1966171168
  %v1349 = vunpack.c.0.s8 %v1348
  %v1350 = vlaneseq
  %v1351 = vshrl.u32 %v1350, 7
  %v1352 = vsub.s32 %v1349, %v1351
  %v1353 = vrot.slane %v1345, %v1352
  %v1355 = vunpack.c.l.s4 1966171168
  %v1356 = vunpack.c.0.s8 %v1355
  %v1357 = vlaneseq
  %v1358 = vshrl.u32 %v1357, 7
  %v1359 = vsub.s32 %v1356, %v1358
  %v1360 = vrot.slane %v1346, %v1359
  %v1361 = vlaneseq
  %v1362 = vshrl.u32 %v1361, 7
  %v1363 = vsub.s32 0, %v1362
  %v1364 = vrot.slane %v1353, %v1363
  %v1365 = vlaneseq
  %v1366 = vshrl.u32 %v1365, 7
  %v1367 = vsub.s32 0, %v1366
  %v1368 = vrot.slane %v1360, %v1367
  %v1371 = vmul.f32 %v1364, %v1254
  %v1372 = vmul.f32 %v1364, %v1255
  %v1373 = vmul.f32 %v1368, %v1254
  %v1374 = vmul.f32 %v1368, %v1255
  %v1375 = vadd.f32 %v1238, %v1371
  %v1376 = vadd.f32 %v1239, %v1372
  %v1377 = vadd.f32 %v1240, %v1373
  %v1378 = vadd.f32 %v1241, %v1374
  %s1379 = scalar_lea.vmem %s0, 20
  %v1380 = vld [vmem:[%s1379] sm:$0x3]
  %s1381 = scalar_lea.vmem %s0, 52
  %v1382 = vld [vmem:[%s1381] sm:$0x3]
  %v1383 = vadd.f32 %v1380, %v1382
  %s1384 = scalar_lea.vmem %s1, 160
  %v1385 = vld [vmem:[%s1384] sm:$0xff]
  %v1386 = vld [vmem:[%s1384 + $0x8] sm:$0xff]
  %s1387 = scalar_lea.vmem %s1, 416
  %v1388 = vld [vmem:[%s1387] sm:$0xff]
  %v1389 = vld [vmem:[%s1387 + $0x8] sm:$0xff]
  %s1390 = scalar_lea.vmem %s1, 672
  %v1391 = vld [vmem:[%s1390] sm:$0xff]
  %v1392 = vld [vmem:[%s1390 + $0x8] sm:$0xff]
  %v1395 = vunpack.c.l.s4 1966171168
  %v1396 = vunpack.c.0.s8 %v1395
  %v1397 = vlaneseq
  %v1398 = vshrl.u32 %v1397, 7
  %v1399 = vsub.s32 %v1396, %v1398
  %v1400 = vrot.slane %v1380, %v1399
  %v1401 = vcombine.high %v1400, %v1400
  %v1403 = vunpack.c.l.s4 1966171168
  %v1404 = vunpack.c.0.s8 %v1403
  %v1405 = vlaneseq
  %v1406 = vshrl.u32 %v1405, 7
  %v1407 = vsub.s32 %v1404, %v1406
  %v1408 = vrot.slane %v1400, %v1407
  %v1410 = vunpack.c.l.s4 1966171168
  %v1411 = vunpack.c.0.s8 %v1410
  %v1412 = vlaneseq
  %v1413 = vshrl.u32 %v1412, 7
  %v1414 = vsub.s32 %v1411, %v1413
  %v1415 = vrot.slane %v1401, %v1414
  %v1416 = vlaneseq
  %v1417 = vshrl.u32 %v1416, 7
  %v1418 = vsub.s32 0, %v1417
  %v1419 = vrot.slane %v1408, %v1418
  %v1420 = vlaneseq
  %v1421 = vshrl.u32 %v1420, 7
  %v1422 = vsub.s32 0, %v1421
  %v1423 = vrot.slane %v1415, %v1422
  %v1426 = vmul.f32 %v1419, %v1385
  %v1427 = vmul.f32 %v1419, %v1386
  %v1428 = vmul.f32 %v1423, %v1385
  %v1429 = vmul.f32 %v1423, %v1386
  %v1430 = vadd.f32 %v1293, %v1426
  %v1431 = vadd.f32 %v1294, %v1427
  %v1432 = vadd.f32 %v1295, %v1428
  %v1433 = vadd.f32 %v1296, %v1429
  %v1436 = vunpack.c.l.s4 1966171168
  %v1437 = vunpack.c.0.s8 %v1436
  %v1438 = vlaneseq
  %v1439 = vshrl.u32 %v1438, 7
  %v1440 = vsub.s32 %v1437, %v1439
  %v1441 = vrot.slane %v1382, %v1440
  %v1442 = vcombine.high %v1441, %v1441
  %v1444 = vunpack.c.l.s4 1966171168
  %v1445 = vunpack.c.0.s8 %v1444
  %v1446 = vlaneseq
  %v1447 = vshrl.u32 %v1446, 7
  %v1448 = vsub.s32 %v1445, %v1447
  %v1449 = vrot.slane %v1441, %v1448
  %v1451 = vunpack.c.l.s4 1966171168
  %v1452 = vunpack.c.0.s8 %v1451
  %v1453 = vlaneseq
  %v1454 = vshrl.u32 %v1453, 7
  %v1455 = vsub.s32 %v1452, %v1454
  %v1456 = vrot.slane %v1442, %v1455
  %v1457 = vlaneseq
  %v1458 = vshrl.u32 %v1457, 7
  %v1459 = vsub.s32 0, %v1458
  %v1460 = vrot.slane %v1449, %v1459
  %v1461 = vlaneseq
  %v1462 = vshrl.u32 %v1461, 7
  %v1463 = vsub.s32 0, %v1462
  %v1464 = vrot.slane %v1456, %v1463
  %v1467 = vmul.f32 %v1460, %v1388
  %v1468 = vmul.f32 %v1460, %v1389
  %v1469 = vmul.f32 %v1464, %v1388
  %v1470 = vmul.f32 %v1464, %v1389
  %v1471 = vadd.f32 %v1334, %v1467
  %v1472 = vadd.f32 %v1335, %v1468
  %v1473 = vadd.f32 %v1336, %v1469
  %v1474 = vadd.f32 %v1337, %v1470
  %v1477 = vunpack.c.l.s4 1966171168
  %v1478 = vunpack.c.0.s8 %v1477
  %v1479 = vlaneseq
  %v1480 = vshrl.u32 %v1479, 7
  %v1481 = vsub.s32 %v1478, %v1480
  %v1482 = vrot.slane %v1383, %v1481
  %v1483 = vcombine.high %v1482, %v1482
  %v1485 = vunpack.c.l.s4 1966171168
  %v1486 = vunpack.c.0.s8 %v1485
  %v1487 = vlaneseq
  %v1488 = vshrl.u32 %v1487, 7
  %v1489 = vsub.s32 %v1486, %v1488
  %v1490 = vrot.slane %v1482, %v1489
  %v1492 = vunpack.c.l.s4 1966171168
  %v1493 = vunpack.c.0.s8 %v1492
  %v1494 = vlaneseq
  %v1495 = vshrl.u32 %v1494, 7
  %v1496 = vsub.s32 %v1493, %v1495
  %v1497 = vrot.slane %v1483, %v1496
  %v1498 = vlaneseq
  %v1499 = vshrl.u32 %v1498, 7
  %v1500 = vsub.s32 0, %v1499
  %v1501 = vrot.slane %v1490, %v1500
  %v1502 = vlaneseq
  %v1503 = vshrl.u32 %v1502, 7
  %v1504 = vsub.s32 0, %v1503
  %v1505 = vrot.slane %v1497, %v1504
  %v1508 = vmul.f32 %v1501, %v1391
  %v1509 = vmul.f32 %v1501, %v1392
  %v1510 = vmul.f32 %v1505, %v1391
  %v1511 = vmul.f32 %v1505, %v1392
  %v1512 = vadd.f32 %v1375, %v1508
  %v1513 = vadd.f32 %v1376, %v1509
  %v1514 = vadd.f32 %v1377, %v1510
  %v1515 = vadd.f32 %v1378, %v1511
  %s1516 = scalar_lea.vmem %s0, 22
  %v1517 = vld [vmem:[%s1516] sm:$0x3]
  %s1518 = scalar_lea.vmem %s0, 54
  %v1519 = vld [vmem:[%s1518] sm:$0x3]
  %v1520 = vadd.f32 %v1517, %v1519
  %s1521 = scalar_lea.vmem %s1, 176
  %v1522 = vld [vmem:[%s1521] sm:$0xff]
  %v1523 = vld [vmem:[%s1521 + $0x8] sm:$0xff]
  %s1524 = scalar_lea.vmem %s1, 432
  %v1525 = vld [vmem:[%s1524] sm:$0xff]
  %v1526 = vld [vmem:[%s1524 + $0x8] sm:$0xff]
  %s1527 = scalar_lea.vmem %s1, 688
  %v1528 = vld [vmem:[%s1527] sm:$0xff]
  %v1529 = vld [vmem:[%s1527 + $0x8] sm:$0xff]
  %v1532 = vunpack.c.l.s4 1966171168
  %v1533 = vunpack.c.0.s8 %v1532
  %v1534 = vlaneseq
  %v1535 = vshrl.u32 %v1534, 7
  %v1536 = vsub.s32 %v1533, %v1535
  %v1537 = vrot.slane %v1517, %v1536
  %v1538 = vcombine.high %v1537, %v1537
  %v1540 = vunpack.c.l.s4 1966171168
  %v1541 = vunpack.c.0.s8 %v1540
  %v1542 = vlaneseq
  %v1543 = vshrl.u32 %v1542, 7
  %v1544 = vsub.s32 %v1541, %v1543
  %v1545 = vrot.slane %v1537, %v1544
  %v1547 = vunpack.c.l.s4 1966171168
  %v1548 = vunpack.c.0.s8 %v1547
  %v1549 = vlaneseq
  %v1550 = vshrl.u32 %v1549, 7
  %v1551 = vsub.s32 %v1548, %v1550
  %v1552 = vrot.slane %v1538, %v1551
  %v1553 = vlaneseq
  %v1554 = vshrl.u32 %v1553, 7
  %v1555 = vsub.s32 0, %v1554
  %v1556 = vrot.slane %v1545, %v1555
  %v1557 = vlaneseq
  %v1558 = vshrl.u32 %v1557, 7
  %v1559 = vsub.s32 0, %v1558
  %v1560 = vrot.slane %v1552, %v1559
  %v1563 = vmul.f32 %v1556, %v1522
  %v1564 = vmul.f32 %v1556, %v1523
  %v1565 = vmul.f32 %v1560, %v1522
  %v1566 = vmul.f32 %v1560, %v1523
  %v1567 = vadd.f32 %v1430, %v1563
  %v1568 = vadd.f32 %v1431, %v1564
  %v1569 = vadd.f32 %v1432, %v1565
  %v1570 = vadd.f32 %v1433, %v1566
  %v1573 = vunpack.c.l.s4 1966171168
  %v1574 = vunpack.c.0.s8 %v1573
  %v1575 = vlaneseq
  %v1576 = vshrl.u32 %v1575, 7
  %v1577 = vsub.s32 %v1574, %v1576
  %v1578 = vrot.slane %v1519, %v1577
  %v1579 = vcombine.high %v1578, %v1578
  %v1581 = vunpack.c.l.s4 1966171168
  %v1582 = vunpack.c.0.s8 %v1581
  %v1583 = vlaneseq
  %v1584 = vshrl.u32 %v1583, 7
  %v1585 = vsub.s32 %v1582, %v1584
  %v1586 = vrot.slane %v1578, %v1585
  %v1588 = vunpack.c.l.s4 1966171168
  %v1589 = vunpack.c.0.s8 %v1588
  %v1590 = vlaneseq
  %v1591 = vshrl.u32 %v1590, 7
  %v1592 = vsub.s32 %v1589, %v1591
  %v1593 = vrot.slane %v1579, %v1592
  %v1594 = vlaneseq
  %v1595 = vshrl.u32 %v1594, 7
  %v1596 = vsub.s32 0, %v1595
  %v1597 = vrot.slane %v1586, %v1596
  %v1598 = vlaneseq
  %v1599 = vshrl.u32 %v1598, 7
  %v1600 = vsub.s32 0, %v1599
  %v1601 = vrot.slane %v1593, %v1600
  %v1604 = vmul.f32 %v1597, %v1525
  %v1605 = vmul.f32 %v1597, %v1526
  %v1606 = vmul.f32 %v1601, %v1525
  %v1607 = vmul.f32 %v1601, %v1526
  %v1608 = vadd.f32 %v1471, %v1604
  %v1609 = vadd.f32 %v1472, %v1605
  %v1610 = vadd.f32 %v1473, %v1606
  %v1611 = vadd.f32 %v1474, %v1607
  %v1614 = vunpack.c.l.s4 1966171168
  %v1615 = vunpack.c.0.s8 %v1614
  %v1616 = vlaneseq
  %v1617 = vshrl.u32 %v1616, 7
  %v1618 = vsub.s32 %v1615, %v1617
  %v1619 = vrot.slane %v1520, %v1618
  %v1620 = vcombine.high %v1619, %v1619
  %v1622 = vunpack.c.l.s4 1966171168
  %v1623 = vunpack.c.0.s8 %v1622
  %v1624 = vlaneseq
  %v1625 = vshrl.u32 %v1624, 7
  %v1626 = vsub.s32 %v1623, %v1625
  %v1627 = vrot.slane %v1619, %v1626
  %v1629 = vunpack.c.l.s4 1966171168
  %v1630 = vunpack.c.0.s8 %v1629
  %v1631 = vlaneseq
  %v1632 = vshrl.u32 %v1631, 7
  %v1633 = vsub.s32 %v1630, %v1632
  %v1634 = vrot.slane %v1620, %v1633
  %v1635 = vlaneseq
  %v1636 = vshrl.u32 %v1635, 7
  %v1637 = vsub.s32 0, %v1636
  %v1638 = vrot.slane %v1627, %v1637
  %v1639 = vlaneseq
  %v1640 = vshrl.u32 %v1639, 7
  %v1641 = vsub.s32 0, %v1640
  %v1642 = vrot.slane %v1634, %v1641
  %v1645 = vmul.f32 %v1638, %v1528
  %v1646 = vmul.f32 %v1638, %v1529
  %v1647 = vmul.f32 %v1642, %v1528
  %v1648 = vmul.f32 %v1642, %v1529
  %v1649 = vadd.f32 %v1512, %v1645
  %v1650 = vadd.f32 %v1513, %v1646
  %v1651 = vadd.f32 %v1514, %v1647
  %v1652 = vadd.f32 %v1515, %v1648
  %s1653 = scalar_lea.vmem %s0, 24
  %v1654 = vld [vmem:[%s1653] sm:$0x3]
  %s1655 = scalar_lea.vmem %s0, 56
  %v1656 = vld [vmem:[%s1655] sm:$0x3]
  %v1657 = vadd.f32 %v1654, %v1656
  %s1658 = scalar_lea.vmem %s1, 192
  %v1659 = vld [vmem:[%s1658] sm:$0xff]
  %v1660 = vld [vmem:[%s1658 + $0x8] sm:$0xff]
  %s1661 = scalar_lea.vmem %s1, 448
  %v1662 = vld [vmem:[%s1661] sm:$0xff]
  %v1663 = vld [vmem:[%s1661 + $0x8] sm:$0xff]
  %s1664 = scalar_lea.vmem %s1, 704
  %v1665 = vld [vmem:[%s1664] sm:$0xff]
  %v1666 = vld [vmem:[%s1664 + $0x8] sm:$0xff]
  %v1669 = vunpack.c.l.s4 1966171168
  %v1670 = vunpack.c.0.s8 %v1669
  %v1671 = vlaneseq
  %v1672 = vshrl.u32 %v1671, 7
  %v1673 = vsub.s32 %v1670, %v1672
  %v1674 = vrot.slane %v1654, %v1673
  %v1675 = vcombine.high %v1674, %v1674
  %v1677 = vunpack.c.l.s4 1966171168
  %v1678 = vunpack.c.0.s8 %v1677
  %v1679 = vlaneseq
  %v1680 = vshrl.u32 %v1679, 7
  %v1681 = vsub.s32 %v1678, %v1680
  %v1682 = vrot.slane %v1674, %v1681
  %v1684 = vunpack.c.l.s4 1966171168
  %v1685 = vunpack.c.0.s8 %v1684
  %v1686 = vlaneseq
  %v1687 = vshrl.u32 %v1686, 7
  %v1688 = vsub.s32 %v1685, %v1687
  %v1689 = vrot.slane %v1675, %v1688
  %v1690 = vlaneseq
  %v1691 = vshrl.u32 %v1690, 7
  %v1692 = vsub.s32 0, %v1691
  %v1693 = vrot.slane %v1682, %v1692
  %v1694 = vlaneseq
  %v1695 = vshrl.u32 %v1694, 7
  %v1696 = vsub.s32 0, %v1695
  %v1697 = vrot.slane %v1689, %v1696
  %v1700 = vmul.f32 %v1693, %v1659
  %v1701 = vmul.f32 %v1693, %v1660
  %v1702 = vmul.f32 %v1697, %v1659
  %v1703 = vmul.f32 %v1697, %v1660
  %v1704 = vadd.f32 %v1567, %v1700
  %v1705 = vadd.f32 %v1568, %v1701
  %v1706 = vadd.f32 %v1569, %v1702
  %v1707 = vadd.f32 %v1570, %v1703
  %v1710 = vunpack.c.l.s4 1966171168
  %v1711 = vunpack.c.0.s8 %v1710
  %v1712 = vlaneseq
  %v1713 = vshrl.u32 %v1712, 7
  %v1714 = vsub.s32 %v1711, %v1713
  %v1715 = vrot.slane %v1656, %v1714
  %v1716 = vcombine.high %v1715, %v1715
  %v1718 = vunpack.c.l.s4 1966171168
  %v1719 = vunpack.c.0.s8 %v1718
  %v1720 = vlaneseq
  %v1721 = vshrl.u32 %v1720, 7
  %v1722 = vsub.s32 %v1719, %v1721
  %v1723 = vrot.slane %v1715, %v1722
  %v1725 = vunpack.c.l.s4 1966171168
  %v1726 = vunpack.c.0.s8 %v1725
  %v1727 = vlaneseq
  %v1728 = vshrl.u32 %v1727, 7
  %v1729 = vsub.s32 %v1726, %v1728
  %v1730 = vrot.slane %v1716, %v1729
  %v1731 = vlaneseq
  %v1732 = vshrl.u32 %v1731, 7
  %v1733 = vsub.s32 0, %v1732
  %v1734 = vrot.slane %v1723, %v1733
  %v1735 = vlaneseq
  %v1736 = vshrl.u32 %v1735, 7
  %v1737 = vsub.s32 0, %v1736
  %v1738 = vrot.slane %v1730, %v1737
  %v1741 = vmul.f32 %v1734, %v1662
  %v1742 = vmul.f32 %v1734, %v1663
  %v1743 = vmul.f32 %v1738, %v1662
  %v1744 = vmul.f32 %v1738, %v1663
  %v1745 = vadd.f32 %v1608, %v1741
  %v1746 = vadd.f32 %v1609, %v1742
  %v1747 = vadd.f32 %v1610, %v1743
  %v1748 = vadd.f32 %v1611, %v1744
  %v1751 = vunpack.c.l.s4 1966171168
  %v1752 = vunpack.c.0.s8 %v1751
  %v1753 = vlaneseq
  %v1754 = vshrl.u32 %v1753, 7
  %v1755 = vsub.s32 %v1752, %v1754
  %v1756 = vrot.slane %v1657, %v1755
  %v1757 = vcombine.high %v1756, %v1756
  %v1759 = vunpack.c.l.s4 1966171168
  %v1760 = vunpack.c.0.s8 %v1759
  %v1761 = vlaneseq
  %v1762 = vshrl.u32 %v1761, 7
  %v1763 = vsub.s32 %v1760, %v1762
  %v1764 = vrot.slane %v1756, %v1763
  %v1766 = vunpack.c.l.s4 1966171168
  %v1767 = vunpack.c.0.s8 %v1766
  %v1768 = vlaneseq
  %v1769 = vshrl.u32 %v1768, 7
  %v1770 = vsub.s32 %v1767, %v1769
  %v1771 = vrot.slane %v1757, %v1770
  %v1772 = vlaneseq
  %v1773 = vshrl.u32 %v1772, 7
  %v1774 = vsub.s32 0, %v1773
  %v1775 = vrot.slane %v1764, %v1774
  %v1776 = vlaneseq
  %v1777 = vshrl.u32 %v1776, 7
  %v1778 = vsub.s32 0, %v1777
  %v1779 = vrot.slane %v1771, %v1778
  %v1782 = vmul.f32 %v1775, %v1665
  %v1783 = vmul.f32 %v1775, %v1666
  %v1784 = vmul.f32 %v1779, %v1665
  %v1785 = vmul.f32 %v1779, %v1666
  %v1786 = vadd.f32 %v1649, %v1782
  %v1787 = vadd.f32 %v1650, %v1783
  %v1788 = vadd.f32 %v1651, %v1784
  %v1789 = vadd.f32 %v1652, %v1785
  %s1790 = scalar_lea.vmem %s0, 26
  %v1791 = vld [vmem:[%s1790] sm:$0x3]
  %s1792 = scalar_lea.vmem %s0, 58
  %v1793 = vld [vmem:[%s1792] sm:$0x3]
  %v1794 = vadd.f32 %v1791, %v1793
  %s1795 = scalar_lea.vmem %s1, 208
  %v1796 = vld [vmem:[%s1795] sm:$0xff]
  %v1797 = vld [vmem:[%s1795 + $0x8] sm:$0xff]
  %s1798 = scalar_lea.vmem %s1, 464
  %v1799 = vld [vmem:[%s1798] sm:$0xff]
  %v1800 = vld [vmem:[%s1798 + $0x8] sm:$0xff]
  %s1801 = scalar_lea.vmem %s1, 720
  %v1802 = vld [vmem:[%s1801] sm:$0xff]
  %v1803 = vld [vmem:[%s1801 + $0x8] sm:$0xff]
  %v1806 = vunpack.c.l.s4 1966171168
  %v1807 = vunpack.c.0.s8 %v1806
  %v1808 = vlaneseq
  %v1809 = vshrl.u32 %v1808, 7
  %v1810 = vsub.s32 %v1807, %v1809
  %v1811 = vrot.slane %v1791, %v1810
  %v1812 = vcombine.high %v1811, %v1811
  %v1814 = vunpack.c.l.s4 1966171168
  %v1815 = vunpack.c.0.s8 %v1814
  %v1816 = vlaneseq
  %v1817 = vshrl.u32 %v1816, 7
  %v1818 = vsub.s32 %v1815, %v1817
  %v1819 = vrot.slane %v1811, %v1818
  %v1821 = vunpack.c.l.s4 1966171168
  %v1822 = vunpack.c.0.s8 %v1821
  %v1823 = vlaneseq
  %v1824 = vshrl.u32 %v1823, 7
  %v1825 = vsub.s32 %v1822, %v1824
  %v1826 = vrot.slane %v1812, %v1825
  %v1827 = vlaneseq
  %v1828 = vshrl.u32 %v1827, 7
  %v1829 = vsub.s32 0, %v1828
  %v1830 = vrot.slane %v1819, %v1829
  %v1831 = vlaneseq
  %v1832 = vshrl.u32 %v1831, 7
  %v1833 = vsub.s32 0, %v1832
  %v1834 = vrot.slane %v1826, %v1833
  %v1837 = vmul.f32 %v1830, %v1796
  %v1838 = vmul.f32 %v1830, %v1797
  %v1839 = vmul.f32 %v1834, %v1796
  %v1840 = vmul.f32 %v1834, %v1797
  %v1841 = vadd.f32 %v1704, %v1837
  %v1842 = vadd.f32 %v1705, %v1838
  %v1843 = vadd.f32 %v1706, %v1839
  %v1844 = vadd.f32 %v1707, %v1840
  %v1847 = vunpack.c.l.s4 1966171168
  %v1848 = vunpack.c.0.s8 %v1847
  %v1849 = vlaneseq
  %v1850 = vshrl.u32 %v1849, 7
  %v1851 = vsub.s32 %v1848, %v1850
  %v1852 = vrot.slane %v1793, %v1851
  %v1853 = vcombine.high %v1852, %v1852
  %v1855 = vunpack.c.l.s4 1966171168
  %v1856 = vunpack.c.0.s8 %v1855
  %v1857 = vlaneseq
  %v1858 = vshrl.u32 %v1857, 7
  %v1859 = vsub.s32 %v1856, %v1858
  %v1860 = vrot.slane %v1852, %v1859
  %v1862 = vunpack.c.l.s4 1966171168
  %v1863 = vunpack.c.0.s8 %v1862
  %v1864 = vlaneseq
  %v1865 = vshrl.u32 %v1864, 7
  %v1866 = vsub.s32 %v1863, %v1865
  %v1867 = vrot.slane %v1853, %v1866
  %v1868 = vlaneseq
  %v1869 = vshrl.u32 %v1868, 7
  %v1870 = vsub.s32 0, %v1869
  %v1871 = vrot.slane %v1860, %v1870
  %v1872 = vlaneseq
  %v1873 = vshrl.u32 %v1872, 7
  %v1874 = vsub.s32 0, %v1873
  %v1875 = vrot.slane %v1867, %v1874
  %v1878 = vmul.f32 %v1871, %v1799
  %v1879 = vmul.f32 %v1871, %v1800
  %v1880 = vmul.f32 %v1875, %v1799
  %v1881 = vmul.f32 %v1875, %v1800
  %v1882 = vadd.f32 %v1745, %v1878
  %v1883 = vadd.f32 %v1746, %v1879
  %v1884 = vadd.f32 %v1747, %v1880
  %v1885 = vadd.f32 %v1748, %v1881
  %v1888 = vunpack.c.l.s4 1966171168
  %v1889 = vunpack.c.0.s8 %v1888
  %v1890 = vlaneseq
  %v1891 = vshrl.u32 %v1890, 7
  %v1892 = vsub.s32 %v1889, %v1891
  %v1893 = vrot.slane %v1794, %v1892
  %v1894 = vcombine.high %v1893, %v1893
  %v1896 = vunpack.c.l.s4 1966171168
  %v1897 = vunpack.c.0.s8 %v1896
  %v1898 = vlaneseq
  %v1899 = vshrl.u32 %v1898, 7
  %v1900 = vsub.s32 %v1897, %v1899
  %v1901 = vrot.slane %v1893, %v1900
  %v1903 = vunpack.c.l.s4 1966171168
  %v1904 = vunpack.c.0.s8 %v1903
  %v1905 = vlaneseq
  %v1906 = vshrl.u32 %v1905, 7
  %v1907 = vsub.s32 %v1904, %v1906
  %v1908 = vrot.slane %v1894, %v1907
  %v1909 = vlaneseq
  %v1910 = vshrl.u32 %v1909, 7
  %v1911 = vsub.s32 0, %v1910
  %v1912 = vrot.slane %v1901, %v1911
  %v1913 = vlaneseq
  %v1914 = vshrl.u32 %v1913, 7
  %v1915 = vsub.s32 0, %v1914
  %v1916 = vrot.slane %v1908, %v1915
  %v1919 = vmul.f32 %v1912, %v1802
  %v1920 = vmul.f32 %v1912, %v1803
  %v1921 = vmul.f32 %v1916, %v1802
  %v1922 = vmul.f32 %v1916, %v1803
  %v1923 = vadd.f32 %v1786, %v1919
  %v1924 = vadd.f32 %v1787, %v1920
  %v1925 = vadd.f32 %v1788, %v1921
  %v1926 = vadd.f32 %v1789, %v1922
  %s1927 = scalar_lea.vmem %s0, 28
  %v1928 = vld [vmem:[%s1927] sm:$0x3]
  %s1929 = scalar_lea.vmem %s0, 60
  %v1930 = vld [vmem:[%s1929] sm:$0x3]
  %v1931 = vadd.f32 %v1928, %v1930
  %s1932 = scalar_lea.vmem %s1, 224
  %v1933 = vld [vmem:[%s1932] sm:$0xff]
  %v1934 = vld [vmem:[%s1932 + $0x8] sm:$0xff]
  %s1935 = scalar_lea.vmem %s1, 480
  %v1936 = vld [vmem:[%s1935] sm:$0xff]
  %v1937 = vld [vmem:[%s1935 + $0x8] sm:$0xff]
  %s1938 = scalar_lea.vmem %s1, 736
  %v1939 = vld [vmem:[%s1938] sm:$0xff]
  %v1940 = vld [vmem:[%s1938 + $0x8] sm:$0xff]
  %v1943 = vunpack.c.l.s4 1966171168
  %v1944 = vunpack.c.0.s8 %v1943
  %v1945 = vlaneseq
  %v1946 = vshrl.u32 %v1945, 7
  %v1947 = vsub.s32 %v1944, %v1946
  %v1948 = vrot.slane %v1928, %v1947
  %v1949 = vcombine.high %v1948, %v1948
  %v1951 = vunpack.c.l.s4 1966171168
  %v1952 = vunpack.c.0.s8 %v1951
  %v1953 = vlaneseq
  %v1954 = vshrl.u32 %v1953, 7
  %v1955 = vsub.s32 %v1952, %v1954
  %v1956 = vrot.slane %v1948, %v1955
  %v1958 = vunpack.c.l.s4 1966171168
  %v1959 = vunpack.c.0.s8 %v1958
  %v1960 = vlaneseq
  %v1961 = vshrl.u32 %v1960, 7
  %v1962 = vsub.s32 %v1959, %v1961
  %v1963 = vrot.slane %v1949, %v1962
  %v1964 = vlaneseq
  %v1965 = vshrl.u32 %v1964, 7
  %v1966 = vsub.s32 0, %v1965
  %v1967 = vrot.slane %v1956, %v1966
  %v1968 = vlaneseq
  %v1969 = vshrl.u32 %v1968, 7
  %v1970 = vsub.s32 0, %v1969
  %v1971 = vrot.slane %v1963, %v1970
  %v1974 = vmul.f32 %v1967, %v1933
  %v1975 = vmul.f32 %v1967, %v1934
  %v1976 = vmul.f32 %v1971, %v1933
  %v1977 = vmul.f32 %v1971, %v1934
  %v1978 = vadd.f32 %v1841, %v1974
  %v1979 = vadd.f32 %v1842, %v1975
  %v1980 = vadd.f32 %v1843, %v1976
  %v1981 = vadd.f32 %v1844, %v1977
  %v1984 = vunpack.c.l.s4 1966171168
  %v1985 = vunpack.c.0.s8 %v1984
  %v1986 = vlaneseq
  %v1987 = vshrl.u32 %v1986, 7
  %v1988 = vsub.s32 %v1985, %v1987
  %v1989 = vrot.slane %v1930, %v1988
  %v1990 = vcombine.high %v1989, %v1989
  %v1992 = vunpack.c.l.s4 1966171168
  %v1993 = vunpack.c.0.s8 %v1992
  %v1994 = vlaneseq
  %v1995 = vshrl.u32 %v1994, 7
  %v1996 = vsub.s32 %v1993, %v1995
  %v1997 = vrot.slane %v1989, %v1996
  %v1999 = vunpack.c.l.s4 1966171168
  %v2000 = vunpack.c.0.s8 %v1999
  %v2001 = vlaneseq
  %v2002 = vshrl.u32 %v2001, 7
  %v2003 = vsub.s32 %v2000, %v2002
  %v2004 = vrot.slane %v1990, %v2003
  %v2005 = vlaneseq
  %v2006 = vshrl.u32 %v2005, 7
  %v2007 = vsub.s32 0, %v2006
  %v2008 = vrot.slane %v1997, %v2007
  %v2009 = vlaneseq
  %v2010 = vshrl.u32 %v2009, 7
  %v2011 = vsub.s32 0, %v2010
  %v2012 = vrot.slane %v2004, %v2011
  %v2015 = vmul.f32 %v2008, %v1936
  %v2016 = vmul.f32 %v2008, %v1937
  %v2017 = vmul.f32 %v2012, %v1936
  %v2018 = vmul.f32 %v2012, %v1937
  %v2019 = vadd.f32 %v1882, %v2015
  %v2020 = vadd.f32 %v1883, %v2016
  %v2021 = vadd.f32 %v1884, %v2017
  %v2022 = vadd.f32 %v1885, %v2018
  %v2025 = vunpack.c.l.s4 1966171168
  %v2026 = vunpack.c.0.s8 %v2025
  %v2027 = vlaneseq
  %v2028 = vshrl.u32 %v2027, 7
  %v2029 = vsub.s32 %v2026, %v2028
  %v2030 = vrot.slane %v1931, %v2029
  %v2031 = vcombine.high %v2030, %v2030
  %v2033 = vunpack.c.l.s4 1966171168
  %v2034 = vunpack.c.0.s8 %v2033
  %v2035 = vlaneseq
  %v2036 = vshrl.u32 %v2035, 7
  %v2037 = vsub.s32 %v2034, %v2036
  %v2038 = vrot.slane %v2030, %v2037
  %v2040 = vunpack.c.l.s4 1966171168
  %v2041 = vunpack.c.0.s8 %v2040
  %v2042 = vlaneseq
  %v2043 = vshrl.u32 %v2042, 7
  %v2044 = vsub.s32 %v2041, %v2043
  %v2045 = vrot.slane %v2031, %v2044
  %v2046 = vlaneseq
  %v2047 = vshrl.u32 %v2046, 7
  %v2048 = vsub.s32 0, %v2047
  %v2049 = vrot.slane %v2038, %v2048
  %v2050 = vlaneseq
  %v2051 = vshrl.u32 %v2050, 7
  %v2052 = vsub.s32 0, %v2051
  %v2053 = vrot.slane %v2045, %v2052
  %v2056 = vmul.f32 %v2049, %v1939
  %v2057 = vmul.f32 %v2049, %v1940
  %v2058 = vmul.f32 %v2053, %v1939
  %v2059 = vmul.f32 %v2053, %v1940
  %v2060 = vadd.f32 %v1923, %v2056
  %v2061 = vadd.f32 %v1924, %v2057
  %v2062 = vadd.f32 %v1925, %v2058
  %v2063 = vadd.f32 %v1926, %v2059
  %s2064 = scalar_lea.vmem %s0, 30
  %v2065 = vld [vmem:[%s2064] sm:$0x3]
  %s2066 = scalar_lea.vmem %s0, 62
  %v2067 = vld [vmem:[%s2066] sm:$0x3]
  %v2068 = vadd.f32 %v2065, %v2067
  %s2069 = scalar_lea.vmem %s1, 240
  %v2070 = vld [vmem:[%s2069] sm:$0xff]
  %v2071 = vld [vmem:[%s2069 + $0x8] sm:$0xff]
  %s2072 = scalar_lea.vmem %s1, 496
  %v2073 = vld [vmem:[%s2072] sm:$0xff]
  %v2074 = vld [vmem:[%s2072 + $0x8] sm:$0xff]
  %s2075 = scalar_lea.vmem %s1, 752
  %v2076 = vld [vmem:[%s2075] sm:$0xff]
  %v2077 = vld [vmem:[%s2075 + $0x8] sm:$0xff]
  %v2080 = vunpack.c.l.s4 1966171168
  %v2081 = vunpack.c.0.s8 %v2080
  %v2082 = vlaneseq
  %v2083 = vshrl.u32 %v2082, 7
  %v2084 = vsub.s32 %v2081, %v2083
  %v2085 = vrot.slane %v2065, %v2084
  %v2086 = vcombine.high %v2085, %v2085
  %v2088 = vunpack.c.l.s4 1966171168
  %v2089 = vunpack.c.0.s8 %v2088
  %v2090 = vlaneseq
  %v2091 = vshrl.u32 %v2090, 7
  %v2092 = vsub.s32 %v2089, %v2091
  %v2093 = vrot.slane %v2085, %v2092
  %v2095 = vunpack.c.l.s4 1966171168
  %v2096 = vunpack.c.0.s8 %v2095
  %v2097 = vlaneseq
  %v2098 = vshrl.u32 %v2097, 7
  %v2099 = vsub.s32 %v2096, %v2098
  %v2100 = vrot.slane %v2086, %v2099
  %v2101 = vlaneseq
  %v2102 = vshrl.u32 %v2101, 7
  %v2103 = vsub.s32 0, %v2102
  %v2104 = vrot.slane %v2093, %v2103
  %v2105 = vlaneseq
  %v2106 = vshrl.u32 %v2105, 7
  %v2107 = vsub.s32 0, %v2106
  %v2108 = vrot.slane %v2100, %v2107
  %v2111 = vmul.f32 %v2104, %v2070
  %v2112 = vmul.f32 %v2104, %v2071
  %v2113 = vmul.f32 %v2108, %v2070
  %v2114 = vmul.f32 %v2108, %v2071
  %v2115 = vadd.f32 %v1978, %v2111
  %v2116 = vadd.f32 %v1979, %v2112
  %v2117 = vadd.f32 %v1980, %v2113
  %v2118 = vadd.f32 %v1981, %v2114
  %v2121 = vunpack.c.l.s4 1966171168
  %v2122 = vunpack.c.0.s8 %v2121
  %v2123 = vlaneseq
  %v2124 = vshrl.u32 %v2123, 7
  %v2125 = vsub.s32 %v2122, %v2124
  %v2126 = vrot.slane %v2067, %v2125
  %v2127 = vcombine.high %v2126, %v2126
  %v2129 = vunpack.c.l.s4 1966171168
  %v2130 = vunpack.c.0.s8 %v2129
  %v2131 = vlaneseq
  %v2132 = vshrl.u32 %v2131, 7
  %v2133 = vsub.s32 %v2130, %v2132
  %v2134 = vrot.slane %v2126, %v2133
  %v2136 = vunpack.c.l.s4 1966171168
  %v2137 = vunpack.c.0.s8 %v2136
  %v2138 = vlaneseq
  %v2139 = vshrl.u32 %v2138, 7
  %v2140 = vsub.s32 %v2137, %v2139
  %v2141 = vrot.slane %v2127, %v2140
  %v2142 = vlaneseq
  %v2143 = vshrl.u32 %v2142, 7
  %v2144 = vsub.s32 0, %v2143
  %v2145 = vrot.slane %v2134, %v2144
  %v2146 = vlaneseq
  %v2147 = vshrl.u32 %v2146, 7
  %v2148 = vsub.s32 0, %v2147
  %v2149 = vrot.slane %v2141, %v2148
  %v2152 = vmul.f32 %v2145, %v2073
  %v2153 = vmul.f32 %v2145, %v2074
  %v2154 = vmul.f32 %v2149, %v2073
  %v2155 = vmul.f32 %v2149, %v2074
  %v2156 = vadd.f32 %v2019, %v2152
  %v2157 = vadd.f32 %v2020, %v2153
  %v2158 = vadd.f32 %v2021, %v2154
  %v2159 = vadd.f32 %v2022, %v2155
  %v2162 = vunpack.c.l.s4 1966171168
  %v2163 = vunpack.c.0.s8 %v2162
  %v2164 = vlaneseq
  %v2165 = vshrl.u32 %v2164, 7
  %v2166 = vsub.s32 %v2163, %v2165
  %v2167 = vrot.slane %v2068, %v2166
  %v2168 = vcombine.high %v2167, %v2167
  %v2170 = vunpack.c.l.s4 1966171168
  %v2171 = vunpack.c.0.s8 %v2170
  %v2172 = vlaneseq
  %v2173 = vshrl.u32 %v2172, 7
  %v2174 = vsub.s32 %v2171, %v2173
  %v2175 = vrot.slane %v2167, %v2174
  %v2177 = vunpack.c.l.s4 1966171168
  %v2178 = vunpack.c.0.s8 %v2177
  %v2179 = vlaneseq
  %v2180 = vshrl.u32 %v2179, 7
  %v2181 = vsub.s32 %v2178, %v2180
  %v2182 = vrot.slane %v2168, %v2181
  %v2183 = vlaneseq
  %v2184 = vshrl.u32 %v2183, 7
  %v2185 = vsub.s32 0, %v2184
  %v2186 = vrot.slane %v2175, %v2185
  %v2187 = vlaneseq
  %v2188 = vshrl.u32 %v2187, 7
  %v2189 = vsub.s32 0, %v2188
  %v2190 = vrot.slane %v2182, %v2189
  %v2193 = vmul.f32 %v2186, %v2076
  %v2194 = vmul.f32 %v2186, %v2077
  %v2195 = vmul.f32 %v2190, %v2076
  %v2196 = vmul.f32 %v2190, %v2077
  %v2197 = vadd.f32 %v2060, %v2193
  %v2198 = vadd.f32 %v2061, %v2194
  %v2199 = vadd.f32 %v2062, %v2195
  %v2200 = vadd.f32 %v2063, %v2196
  %v2201 = vsub.f32 %v2115, %v2156
  %v2202 = vsub.f32 %v2116, %v2157
  %v2203 = vsub.f32 %v2117, %v2158
  %v2204 = vsub.f32 %v2118, %v2159
  %2205 = vst [vmem:[%s2] sm:$0xff] %v2201
  %2206 = vst [vmem:[%s2 + $0x8] sm:$0xff] %v2202
  %2207 = vst [vmem:[%s2 + $0x10] sm:$0xff] %v2203
  %2208 = vst [vmem:[%s2 + $0x18] sm:$0xff] %v2204
  %v2209 = vsub.f32 %v2197, %v2115
  %v2210 = vsub.f32 %v2198, %v2116
  %v2211 = vsub.f32 %v2199, %v2117
  %v2212 = vsub.f32 %v2200, %v2118
  %v2213 = vsub.f32 %v2209, %v2156
  %v2214 = vsub.f32 %v2210, %v2157
  %v2215 = vsub.f32 %v2211, %v2158
  %v2216 = vsub.f32 %v2212, %v2159
  %s2217 = scalar_lea.vmem %s2, 32
  %2218 = vst [vmem:[%s2217] sm:$0xff] %v2213
  %2219 = vst [vmem:[%s2217 + $0x8] sm:$0xff] %v2214
  %2220 = vst [vmem:[%s2217 + $0x10] sm:$0xff] %v2215
  %2221 = vst [vmem:[%s2217 + $0x18] sm:$0xff] %v2216
  // Predicated region
  $region10: #{fno2d_forward.3} parent=0 // pred_check
    _
  $region11: #{fno2d_forward.3} parent=0 // pred_check_branch
    %2223 = sbr.rel (0) target = $region13
  $region12: #{fno2d_forward.3} parent=0 // pred_region
    _
  $region13: #{fno2d_forward.3} parent=0 // pred_fallthru
    _
  // Predicated region
  $region14: #{fno2d_forward.3} parent=0 // pred_check
    _
  $region15: #{fno2d_forward.3} parent=0 // pred_check_branch
    %2225 = sbr.rel (0) target = $region17
  $region16: #{fno2d_forward.3} parent=0 // pred_region
    _
  $region17: #{fno2d_forward.3} parent=0 // pred_fallthru
    _

</llo_original>
